<compile_context>
chip_gen: v5e
topology: v5e:2x2
jax: 0.10.0
libtpu: 0.0.40
codegen_flags: <defaults>
</compile_context>

<pallas_src>
import jax
import jax.numpy as jnp
from jax.experimental import pallas as pl
from jax.experimental.pallas import tpu as pltpu

LN_EPS = 1e-5  # PyTorch nn.LayerNorm default


# ----------------------------------------------------------------------------
# Fused kernel: all views at once via block-diagonal matmuls, then softmax over
# views and the attention-weighted sum, per batch tile.
# ----------------------------------------------------------------------------
def make_fused_kernel(depth: int):
    def kernel(x_ref, ln_g, ln_b, m_in, e_in, w1, b1, *rest):
        # rest layout:
        #   [m_h, e_h, (hg, hb, hw, hbb) * depth]   (only when depth > 0)
        #   w2, b2, wl, bl, wp, bp, e_p, g_sum, out_ref, attn_ref
        if depth:
            m_h, e_h = rest[0], rest[1]
            h_refs = rest[2:2 + 4 * depth]
            rest = rest[2 + 4 * depth:]
        else:
            h_refs = ()
        w2, b2, wl, bl, wp, bp, e_p, g_sum, out_ref, attn_ref = rest

        f32 = jnp.float32

        def seg_layernorm(v, m_ref, e_ref, g_ref, b_ref):
            # One-pass per-view-segment LayerNorm, fully lane-dense:
            # per-segment E[x], E[x^2] via indicator matmul, broadcast back the
            # same way (no unaligned slices / concats inside the kernel).
            m = m_ref[...]
            e = e_ref[...]
            mu_s = jnp.dot(v, m, preferred_element_type=f32)        # (TB, V)
            ms_s = jnp.dot(v * v, m, preferred_element_type=f32)    # (TB, V)
            rstd_s = jax.lax.rsqrt(ms_s - mu_s * mu_s + LN_EPS)
            mu = jnp.dot(mu_s, e, preferred_element_type=f32)       # (TB, D)
            rstd = jnp.dot(rstd_s, e, preferred_element_type=f32)   # (TB, D)
            return (v - mu) * rstd * g_ref[...] + b_ref[...]

        def mm(a, w_ref):
            # Weights are pre-cast (bf16) on the host; cast only the activation
            # operand here, accumulate in f32.
            w = w_ref[...]
            return jnp.dot(a.astype(w.dtype), w, preferred_element_type=f32)

        # --- input2hidden for all views: LN -> block-diag Linear -> SiLU ------
        x = x_ref[...].astype(f32)                              # (TB, sum(dims))
        h = mm(seg_layernorm(x, m_in, e_in, ln_g, ln_b), w1) + b1[...]
        h = h * jax.nn.sigmoid(h)                               # SiLU; Dropout=id

        # --- residual hidden layers -------------------------------------------
        for d in range(depth):
            hg, hb, hw, hbb = h_refs[4 * d:4 * d + 4]
            t = mm(seg_layernorm(h, m_h, e_h, hg, hb), hw) + hbb[...]
            t = t * jax.nn.sigmoid(t)
            h = h + t

        # --- hidden2output, projection, folded Conv1d logit --------------------
        enc = mm(h, w2) + b2[...]                               # (TB, V*H)
        proj = mm(enc, wp) + bp[...]                            # (TB, V*PW)
        logits = jnp.dot(enc, wl[...],
                         preferred_element_type=f32) + bl[...]  # (TB, V) f32

        # --- softmax over views -------------------------------------------------
        lmax = jnp.max(logits, axis=-1, keepdims=True)
        ex = jnp.exp(logits - lmax)
        attn = ex / jnp.sum(ex, axis=-1, keepdims=True)         # (TB, V)

        # --- attention-weighted sum over per-view projection slabs --------------
        attn_b = jnp.dot(attn, e_p[...], preferred_element_type=f32)   # (TB, V*PW)
        out = jnp.dot(proj * attn_b, g_sum[...],
                      preferred_element_type=f32)                       # (TB, PW)

        out_ref[...] = out.astype(out_ref.dtype)        # lane-dense 128-wide store
        attn_ref[...] = attn.astype(attn_ref.dtype)     # single store for all views

    return kernel


# ----------------------------------------------------------------------------
# Host-side helpers
# ----------------------------------------------------------------------------
def _choose_batch_tile(B: int) -> int:
    # Sublane-aligned tiles; prefer >= 2 grid steps so the "parallel" axis can
    # shard across v7x's two TensorCores; cap at 256 to bound per-tile VMEM.
    if B <= 8:
        return 8
    t = (B // 2) // 8 * 8
    return int(min(256, max(8, t)))


def _vmem_limit_bytes() -> int:
    # Raise the scoped VMEM limit above the 16-32 MiB defaults, staying below
    # physical capacity (v7x: 64 MiB, v5e/v6e: 128 MiB per TensorCore).
    try:
        cap = int(pltpu.get_tpu_info().vmem_capacity_bytes)
        return (cap * 7) // 8
    except Exception:
        return 48 * 1024 * 1024


def plain_branch_forward(packed, x_list, *, batch_tile=None):
    V = packed["num_views"]
    depth = packed["depth"]
    L = packed["latent_dim"]
    PW = packed["proj_pad"]
    B = x_list[0].shape[0]

    # Concatenate the per-view inputs along lanes on the host -> one DMA stream.
    x_cat = jnp.concatenate([x.astype(jnp.float32) for x in x_list], axis=1)
    D_sum = x_cat.shape[1]
    assert D_sum == packed["x_cat_dim"]

    tile = batch_tile if batch_tile is not None else _choose_batch_tile(B)
    n_tiles = pl.cdiv(B, tile)
    B_pad = n_tiles * tile
    if B_pad != B:
        x_cat = jnp.pad(x_cat, ((0, B_pad - B), (0, 0)))   # pad, slice on return

    params_args = [packed["ln_g"], packed["ln_b"], packed["M_in"], packed["E_in"],
                   packed["w1"], packed["b1"]]
    if depth:
        params_args += [packed["M_h"], packed["E_h"]]
        for d in range(depth):
            params_args += [packed["h_ln_g"][d], packed["h_ln_b"][d],
                            packed["h_w"][d], packed["h_b"][d]]
    params_args += [packed["w2"], packed["b2"], packed["wl"], packed["bl"],
                    packed["wp"], packed["bp"], packed["E_p"], packed["G"]]

    def run(single_buffer_weights: bool):
        in_specs = [pl.BlockSpec((tile, D_sum), lambda i: (i, 0))]
        for a in params_args:
            idx = lambda i, _nd=a.ndim: (0,) * _nd
            if single_buffer_weights:
                # Constant block index -> never re-fetched; one buffer suffices.
                in_specs.append(pl.BlockSpec(a.shape, idx,
                                             pipeline_mode=pl.Buffered(1)))
            else:
                in_specs.append(pl.BlockSpec(a.shape, idx))
        return pl.pallas_call(
            make_fused_kernel(depth),
            grid=(n_tiles,),
            in_specs=in_specs,
            out_specs=(pl.BlockSpec((tile, PW), lambda i: (i, 0)),
                       pl.BlockSpec((tile, V), lambda i: (i, 0))),
            out_shape=(jax.ShapeDtypeStruct((B_pad, PW), jnp.float32),
                       jax.ShapeDtypeStruct((B_pad, V), jnp.float32)),
            compiler_params=pltpu.CompilerParams(
                dimension_semantics=("parallel",),
                vmem_limit_bytes=_vmem_limit_bytes()),
        )(x_cat, *params_args)

    try:
        out_pad, attn = run(True)
    except Exception:
        # TODO(synk): this Pallas build rejected pipeline_mode=pl.Buffered(1);
        # fall back to default double-buffered weight specs.
        out_pad, attn = run(False)

    return out_pad[:B, :L], attn[:B, :]


# ----------------------------------------------------------------------------
# Parameter construction (deterministic, PyTorch-style uniform init).
# Linear weights are stored as (in, out) so the math is y = x @ W + b.
# ----------------------------------------------------------------------------
def _linear_init(key, fan_in, fan_out):
    kw, kb = jax.random.split(key)
    bound = 1.0 / jnp.sqrt(fan_in)
    w = jax.random.uniform(kw, (fan_in, fan_out), jnp.float32, -bound, bound)
    b = jax.random.uniform(kb, (1, fan_out), jnp.float32, -bound, bound)
    return w, b


def init_plain_branch_params(key, input_dim_list, hidden_dim, latent_dim, depth):
    params = {"views": [], "depth": depth, "latent_dim": latent_dim,
              "hidden_dim": hidden_dim, "input_dims": list(input_dim_list)}
    for dim in input_dim_list:
        key, k1, k2, kp = jax.random.split(key, 4)
        w1, b1 = _linear_init(k1, dim, hidden_dim)
        w2, b2 = _linear_init(k2, hidden_dim, hidden_dim)
        wp, bp = _linear_init(kp, hidden_dim, latent_dim)
        vp = {"ln_g": jnp.ones((1, dim), jnp.float32),
              "ln_b": jnp.zeros((1, dim), jnp.float32),
              "w1": w1, "b1": b1, "w2": w2, "b2": b2,
              "wp": wp, "bp": bp,
              "h_ln_g": [], "h_ln_b": [], "h_w": [], "h_b": []}
        for _ in range(depth):
            key, kh = jax.random.split(key)
            hw, hb = _linear_init(kh, hidden_dim, hidden_dim)
            vp["h_ln_g"].append(jnp.ones((1, hidden_dim), jnp.float32))
            vp["h_ln_b"].append(jnp.zeros((1, hidden_dim), jnp.float32))
            vp["h_w"].append(hw)
            vp["h_b"].append(hb)
        params["views"].append(vp)

    key, kc = jax.random.split(key)
    conv_w, conv_b = _linear_init(kc, latent_dim, 1)   # Conv1d(latent_dim, 1, 1)
    params["conv_w"] = conv_w                          # (L, 1)
    params["conv_b"] = conv_b                          # (1, 1)
    return params


# ----------------------------------------------------------------------------
# Pack the per-view parameters into block-diagonal / concatenated kernel
# operands (bf16 weights, f32 everything else).
# ----------------------------------------------------------------------------
def pack_plain_branch_params(params, matmul_dtype=jnp.bfloat16):
    views = params["views"]
    V = len(views)
    depth = params["depth"]
    L = params["latent_dim"]
    H = params["hidden_dim"]
    dims = params["input_dims"]
    D_sum = sum(dims)
    PW = max(128, -(-L // 128) * 128)   # lane-dense per-view projection slab

    def block_diag(mats):
        rows = sum(m.shape[0] for m in mats)
        cols = sum(m.shape[1] for m in mats)
        out = jnp.zeros((rows, cols), jnp.float32)
        r = c = 0
        for m in mats:
            out = out.at[r:r + m.shape[0], c:c + m.shape[1]].set(m)
            r += m.shape[0]
            c += m.shape[1]
        return out

    def seg_matrices(widths):
        # M: (sum, V) column v = 1/width_v on segment v   -> per-segment mean
        # E: (V, sum) row v    = 1        on segment v    -> broadcast back
        total = sum(widths)
        M = jnp.zeros((total, len(widths)), jnp.float32)
        E = jnp.zeros((len(widths), total), jnp.float32)
        off = 0
        for v, w in enumerate(widths):
            M = M.at[off:off + w, v].set(1.0 / w)
            E = E.at[v, off:off + w].set(1.0)
            off += w
        return M, E

    M_in, E_in = seg_matrices(dims)
    M_h, E_h = seg_matrices([H] * V)
    conv_w, conv_b = params["conv_w"], params["conv_b"]

    packed = {
        "num_views": V, "depth": depth, "latent_dim": L, "hidden_dim": H,
        "proj_pad": PW, "x_cat_dim": D_sum,
        "ln_g": jnp.concatenate([vp["ln_g"] for vp in views], axis=1),
        "ln_b": jnp.concatenate([vp["ln_b"] for vp in views], axis=1),
        "M_in": M_in, "E_in": E_in, "M_h": M_h, "E_h": E_h,
        "w1": block_diag([vp["w1"] for vp in views]).astype(matmul_dtype),
        "b1": jnp.concatenate([vp["b1"] for vp in views], axis=1),
        "w2": block_diag([vp["w2"] for vp in views]).astype(matmul_dtype),
        "b2": jnp.concatenate([vp["b2"] for vp in views], axis=1),
        "h_ln_g": [], "h_ln_b": [], "h_w": [], "h_b": [],
    }
    for d in range(depth):
        packed["h_ln_g"].append(
            jnp.concatenate([vp["h_ln_g"][d] for vp in views], axis=1))
        packed["h_ln_b"].append(
            jnp.concatenate([vp["h_ln_b"][d] for vp in views], axis=1))
        packed["h_w"].append(
            block_diag([vp["h_w"][d] for vp in views]).astype(matmul_dtype))
        packed["h_b"].append(
            jnp.concatenate([vp["h_b"][d] for vp in views], axis=1))

    # Conv1d(k=1) logit folded into a dedicated f32 matmul from the encoder
    # output: logit_v = enc_v @ (wp_v @ conv_w) + (bp_v @ conv_w + conv_b).
    packed["wl"] = block_diag([vp["wp"] @ conv_w for vp in views])          # (V*H, V)
    packed["bl"] = jnp.concatenate(
        [vp["bp"] @ conv_w + conv_b for vp in views], axis=1)              # (1, V)

    # Projection padded to a lane-dense PW slab per view, block-diag across views.
    wp_pads, bp_pads = [], []
    for vp in views:
        wp_pads.append(jnp.zeros((H, PW), jnp.float32).at[:, :L].set(vp["wp"]))
        bp_pads.append(jnp.zeros((1, PW), jnp.float32).at[:, :L].set(vp["bp"]))
    packed["wp"] = block_diag(wp_pads).astype(matmul_dtype)                 # (V*H, V*PW)
    packed["bp"] = jnp.concatenate(bp_pads, axis=1)                         # (1, V*PW)

    # Broadcast / segment-sum matrices for the attention-weighted view sum.
    _, E_p = seg_matrices([PW] * V)                                         # (V, V*PW)
    packed["E_p"] = E_p
    G = jnp.zeros((V * PW, PW), jnp.float32)
    for v in range(V):
        G = G.at[v * PW:(v + 1) * PW, :].set(jnp.eye(PW, dtype=jnp.float32))
    packed["G"] = G                                                         # (V*PW, PW)
    return packed


# ----------------------------------------------------------------------------
# Pure-JAX reference (mirrors the PyTorch module; conv NOT folded, f32).
# ----------------------------------------------------------------------------
def _layernorm_ref(x, g, b):
    mu = jnp.mean(x, axis=-1, keepdims=True)
    var = jnp.mean((x - mu) ** 2, axis=-1, keepdims=True)
    return (x - mu) * jax.lax.rsqrt(var + LN_EPS) * g + b


def plain_branch_reference(params, x_list):
    depth = params["depth"]
    projs, logits = [], []
    for x, vp in zip(x_list, params["views"]):
        h = _layernorm_ref(x, vp["ln_g"], vp["ln_b"])
        h = h @ vp["w1"] + vp["b1"]
        h = h * jax.nn.sigmoid(h)
        for d in range(depth):
            t = _layernorm_ref(h, vp["h_ln_g"][d], vp["h_ln_b"][d])
            t = t @ vp["h_w"][d] + vp["h_b"][d]
            t = t * jax.nn.sigmoid(t)
            h = h + t
        e = h @ vp["w2"] + vp["b2"]
        p = e @ vp["wp"] + vp["bp"]
        projs.append(p)
        logits.append(p @ params["conv_w"] + params["conv_b"])   # (B, 1)
    logits = jnp.concatenate(logits, axis=-1)                    # (B, V)
    attn = jax.nn.softmax(logits, axis=-1)
    out = sum(p * attn[:, v:v + 1] for v, p in enumerate(projs))
    return out, attn


if __name__ == "__main__":
    key = jax.random.PRNGKey(0)

    input_dim_list = [32, 48, 64]
    hidden_dim = 32
    latent_dim = 64

    # (depth, batch): PlainBranch default depth=0; depth=1 exercises residual
    # layers; batch=20 exercises zero-padding + a multi-tile "parallel" grid.
    configs = [(0, 8), (1, 8), (0, 20)]
    for depth, batch in configs:
        key, kparams = jax.random.split(key)
        params = init_plain_branch_params(kparams, input_dim_list, hidden_dim,
                                          latent_dim, depth)
        packed = pack_plain_branch_params(params, matmul_dtype=jnp.bfloat16)

        x_list = []
        for dim in input_dim_list:
            key, kx = jax.random.split(key)
            x_list.append(jax.random.normal(kx, (batch, dim), jnp.float32))

        out, attn = plain_branch_forward(packed, x_list)
        out = jax.block_until_ready(out)
        attn = jax.block_until_ready(attn)

        assert out.shape == (batch, latent_dim)
        assert attn.shape == (batch, len(input_dim_list))
        # attention values sum to 1 over views
        assert jnp.allclose(jnp.sum(attn, axis=-1), 1.0, atol=1e-5)

        # numerical check vs. pure-JAX f32 reference (validates the conv fold,
        # block-diag packing and padding); bf16 matmul operands -> loose tol.
        out_ref, attn_ref = plain_branch_reference(params, x_list)
        assert bool(jnp.allclose(out, out_ref, atol=5e-2, rtol=5e-2)), \
            float(jnp.max(jnp.abs(out - out_ref)))
        assert bool(jnp.allclose(attn, attn_ref, atol=2e-2)), \
            float(jnp.max(jnp.abs(attn - attn_ref)))

    print("KERNEL_OK")
</pallas_src>

<mosaic_0001>
module attributes {stable_mosaic.version = 11 : i64} {
  func.func @kernel(%arg0: i32, %arg1: memref<8x144xf32, #tpu.memory_space<vmem>>, %arg2: memref<1x144xf32, #tpu.memory_space<vmem>>, %arg3: memref<1x144xf32, #tpu.memory_space<vmem>>, %arg4: memref<144x3xf32, #tpu.memory_space<vmem>>, %arg5: memref<3x144xf32, #tpu.memory_space<vmem>>, %arg6: memref<144x96xbf16, #tpu.memory_space<vmem>>, %arg7: memref<1x96xf32, #tpu.memory_space<vmem>>, %arg8: memref<96x96xbf16, #tpu.memory_space<vmem>>, %arg9: memref<1x96xf32, #tpu.memory_space<vmem>>, %arg10: memref<96x3xf32, #tpu.memory_space<vmem>>, %arg11: memref<1x3xf32, #tpu.memory_space<vmem>>, %arg12: memref<96x384xbf16, #tpu.memory_space<vmem>>, %arg13: memref<1x384xf32, #tpu.memory_space<vmem>>, %arg14: memref<3x384xf32, #tpu.memory_space<vmem>>, %arg15: memref<384x128xf32, #tpu.memory_space<vmem>>, %arg16: memref<8x128xf32, #tpu.memory_space<vmem>>, %arg17: memref<8x3xf32, #tpu.memory_space<vmem>>) attributes {dimension_semantics = [#tpu.dimension_semantics<parallel>], iteration_bounds = array<i64: 1>, scalar_prefetch = 0 : i64, scratch_operands = 0 : i64, tpu.core_type = #tpu.core_type<tc>, window_params = [{transform_indices = @transform_0, window_bounds = array<i64: 8, 144>}, {pipeline_mode = #tpu.pipeline_mode<synchronous>, transform_indices = @transform_1, window_bounds = array<i64: 1, 144>}, {pipeline_mode = #tpu.pipeline_mode<synchronous>, transform_indices = @transform_2, window_bounds = array<i64: 1, 144>}, {pipeline_mode = #tpu.pipeline_mode<synchronous>, transform_indices = @transform_3, window_bounds = array<i64: 144, 3>}, {pipeline_mode = #tpu.pipeline_mode<synchronous>, transform_indices = @transform_4, window_bounds = array<i64: 3, 144>}, {pipeline_mode = #tpu.pipeline_mode<synchronous>, transform_indices = @transform_5, window_bounds = array<i64: 144, 96>}, {pipeline_mode = #tpu.pipeline_mode<synchronous>, transform_indices = @transform_6, window_bounds = array<i64: 1, 96>}, {pipeline_mode = #tpu.pipeline_mode<synchronous>, transform_indices = @transform_7, window_bounds = array<i64: 96, 96>}, {pipeline_mode = #tpu.pipeline_mode<synchronous>, transform_indices = @transform_8, window_bounds = array<i64: 1, 96>}, {pipeline_mode = #tpu.pipeline_mode<synchronous>, transform_indices = @transform_9, window_bounds = array<i64: 96, 3>}, {pipeline_mode = #tpu.pipeline_mode<synchronous>, transform_indices = @transform_10, window_bounds = array<i64: 1, 3>}, {pipeline_mode = #tpu.pipeline_mode<synchronous>, transform_indices = @transform_11, window_bounds = array<i64: 96, 384>}, {pipeline_mode = #tpu.pipeline_mode<synchronous>, transform_indices = @transform_12, window_bounds = array<i64: 1, 384>}, {pipeline_mode = #tpu.pipeline_mode<synchronous>, transform_indices = @transform_13, window_bounds = array<i64: 3, 384>}, {pipeline_mode = #tpu.pipeline_mode<synchronous>, transform_indices = @transform_14, window_bounds = array<i64: 384, 128>}, {transform_indices = @transform_15, window_bounds = array<i64: 8, 128>}, {transform_indices = @transform_16, window_bounds = array<i64: 8, 3>}]} {
    %c0 = arith.constant 0 : index
    %c0_0 = arith.constant 0 : index
    %0 = vector.load %arg1[%c0, %c0_0] : memref<8x144xf32, #tpu.memory_space<vmem>>, vector<8x144xf32>
    %c0_1 = arith.constant 0 : index
    %c0_2 = arith.constant 0 : index
    %1 = vector.load %arg4[%c0_1, %c0_2] : memref<144x3xf32, #tpu.memory_space<vmem>>, vector<144x3xf32>
    %c0_3 = arith.constant 0 : index
    %c0_4 = arith.constant 0 : index
    %2 = vector.load %arg5[%c0_3, %c0_4] : memref<3x144xf32, #tpu.memory_space<vmem>>, vector<3x144xf32>
    %cst = arith.constant dense<0.000000e+00> : vector<8x3xf32>
    %3 = tpu.matmul %0, %1, %cst {dimension_numbers = #tpu.dot_dimension_numbers<[1], [0], [0], [1], [0, 0, 1, 1], [], []>} : vector<8x144xf32>, vector<144x3xf32>, vector<8x3xf32> -> vector<8x3xf32>
    %4 = arith.mulf %0, %0 : vector<8x144xf32>
    %cst_5 = arith.constant dense<0.000000e+00> : vector<8x3xf32>
    %5 = tpu.matmul %4, %1, %cst_5 {dimension_numbers = #tpu.dot_dimension_numbers<[1], [0], [0], [1], [0, 0, 1, 1], [], []>} : vector<8x144xf32>, vector<144x3xf32>, vector<8x3xf32> -> vector<8x3xf32>
    %6 = arith.mulf %3, %3 : vector<8x3xf32>
    %7 = arith.subf %5, %6 : vector<8x3xf32>
    %cst_6 = arith.constant 9.99999974E-6 : f32
    %8 = vector.broadcast %cst_6 : f32 to vector<8x3xf32>
    %9 = arith.addf %7, %8 : vector<8x3xf32>
    %10 = math.rsqrt %9 : vector<8x3xf32>
    %cst_7 = arith.constant dense<0.000000e+00> : vector<8x144xf32>
    %11 = tpu.matmul %3, %2, %cst_7 {dimension_numbers = #tpu.dot_dimension_numbers<[1], [0], [0], [1], [0, 0, 1, 1], [], []>} : vector<8x3xf32>, vector<3x144xf32>, vector<8x144xf32> -> vector<8x144xf32>
    %cst_8 = arith.constant dense<0.000000e+00> : vector<8x144xf32>
    %12 = tpu.matmul %10, %2, %cst_8 {dimension_numbers = #tpu.dot_dimension_numbers<[1], [0], [0], [1], [0, 0, 1, 1], [], []>} : vector<8x3xf32>, vector<3x144xf32>, vector<8x144xf32> -> vector<8x144xf32>
    %13 = arith.subf %0, %11 : vector<8x144xf32>
    %14 = arith.mulf %13, %12 : vector<8x144xf32>
    %c0_9 = arith.constant 0 : index
    %c0_10 = arith.constant 0 : index
    %15 = vector.load %arg2[%c0_9, %c0_10] : memref<1x144xf32, #tpu.memory_space<vmem>>, vector<1x144xf32>
    %16 = vector.broadcast %15 : vector<1x144xf32> to vector<8x144xf32>
    %17 = arith.mulf %14, %16 : vector<8x144xf32>
    %c0_11 = arith.constant 0 : index
    %c0_12 = arith.constant 0 : index
    %18 = vector.load %arg3[%c0_11, %c0_12] : memref<1x144xf32, #tpu.memory_space<vmem>>, vector<1x144xf32>
    %19 = vector.broadcast %18 : vector<1x144xf32> to vector<8x144xf32>
    %20 = arith.addf %17, %19 : vector<8x144xf32>
    %c0_13 = arith.constant 0 : index
    %c0_14 = arith.constant 0 : index
    %21 = vector.load %arg6[%c0_13, %c0_14] : memref<144x96xbf16, #tpu.memory_space<vmem>>, vector<144x96xbf16>
    %22 = arith.truncf %20 : vector<8x144xf32> to vector<8x144xbf16>
    %cst_15 = arith.constant dense<0.000000e+00> : vector<8x96xf32>
    %23 = tpu.matmul %22, %21, %cst_15 {dimension_numbers = #tpu.dot_dimension_numbers<[1], [0], [0], [1], [0, 0, 1, 1], [], []>} : vector<8x144xbf16>, vector<144x96xbf16>, vector<8x96xf32> -> vector<8x96xf32>
    %c0_16 = arith.constant 0 : index
    %c0_17 = arith.constant 0 : index
    %24 = vector.load %arg7[%c0_16, %c0_17] : memref<1x96xf32, #tpu.memory_space<vmem>>, vector<1x96xf32>
    %25 = vector.broadcast %24 : vector<1x96xf32> to vector<8x96xf32>
    %26 = arith.addf %23, %25 : vector<8x96xf32>
    %27 = arith.negf %26 : vector<8x96xf32>
    %28 = math.exp %27 : vector<8x96xf32>
    %cst_18 = arith.constant 1.000000e+00 : f32
    %29 = vector.broadcast %cst_18 : f32 to vector<8x96xf32>
    %30 = arith.addf %29, %28 : vector<8x96xf32>
    %31 = arith.divf %29, %30 : vector<8x96xf32>
    %32 = arith.mulf %26, %31 : vector<8x96xf32>
    %c0_19 = arith.constant 0 : index
    %c0_20 = arith.constant 0 : index
    %33 = vector.load %arg8[%c0_19, %c0_20] : memref<96x96xbf16, #tpu.memory_space<vmem>>, vector<96x96xbf16>
    %34 = arith.truncf %32 : vector<8x96xf32> to vector<8x96xbf16>
    %cst_21 = arith.constant dense<0.000000e+00> : vector<8x96xf32>
    %35 = tpu.matmul %34, %33, %cst_21 {dimension_numbers = #tpu.dot_dimension_numbers<[1], [0], [0], [1], [0, 0, 1, 1], [], []>} : vector<8x96xbf16>, vector<96x96xbf16>, vector<8x96xf32> -> vector<8x96xf32>
    %c0_22 = arith.constant 0 : index
    %c0_23 = arith.constant 0 : index
    %36 = vector.load %arg9[%c0_22, %c0_23] : memref<1x96xf32, #tpu.memory_space<vmem>>, vector<1x96xf32>
    %37 = vector.broadcast %36 : vector<1x96xf32> to vector<8x96xf32>
    %38 = arith.addf %35, %37 : vector<8x96xf32>
    %c0_24 = arith.constant 0 : index
    %c0_25 = arith.constant 0 : index
    %39 = vector.load %arg12[%c0_24, %c0_25] : memref<96x384xbf16, #tpu.memory_space<vmem>>, vector<96x384xbf16>
    %40 = arith.truncf %38 : vector<8x96xf32> to vector<8x96xbf16>
    %cst_26 = arith.constant dense<0.000000e+00> : vector<8x384xf32>
    %41 = tpu.matmul %40, %39, %cst_26 {dimension_numbers = #tpu.dot_dimension_numbers<[1], [0], [0], [1], [0, 0, 1, 1], [], []>} : vector<8x96xbf16>, vector<96x384xbf16>, vector<8x384xf32> -> vector<8x384xf32>
    %c0_27 = arith.constant 0 : index
    %c0_28 = arith.constant 0 : index
    %42 = vector.load %arg13[%c0_27, %c0_28] : memref<1x384xf32, #tpu.memory_space<vmem>>, vector<1x384xf32>
    %43 = vector.broadcast %42 : vector<1x384xf32> to vector<8x384xf32>
    %44 = arith.addf %41, %43 : vector<8x384xf32>
    %c0_29 = arith.constant 0 : index
    %c0_30 = arith.constant 0 : index
    %45 = vector.load %arg10[%c0_29, %c0_30] : memref<96x3xf32, #tpu.memory_space<vmem>>, vector<96x3xf32>
    %cst_31 = arith.constant dense<0.000000e+00> : vector<8x3xf32>
    %46 = tpu.matmul %38, %45, %cst_31 {dimension_numbers = #tpu.dot_dimension_numbers<[1], [0], [0], [1], [0, 0, 1, 1], [], []>} : vector<8x96xf32>, vector<96x3xf32>, vector<8x3xf32> -> vector<8x3xf32>
    %c0_32 = arith.constant 0 : index
    %c0_33 = arith.constant 0 : index
    %47 = vector.load %arg11[%c0_32, %c0_33] : memref<1x3xf32, #tpu.memory_space<vmem>>, vector<1x3xf32>
    %48 = vector.broadcast %47 : vector<1x3xf32> to vector<8x3xf32>
    %49 = arith.addf %46, %48 : vector<8x3xf32>
    %cst_34 = arith.constant dense<0xFF800000> : vector<8xf32>
    %50 = vector.multi_reduction <maximumf>, %49, %cst_34 [1] : vector<8x3xf32> to vector<8xf32>
    %51 = vector.shape_cast %50 : vector<8xf32> to vector<8x1xf32>
    %52 = vector.broadcast %51 : vector<8x1xf32> to vector<8x3xf32>
    %53 = arith.subf %49, %52 : vector<8x3xf32>
    %54 = math.exp %53 : vector<8x3xf32>
    %cst_35 = arith.constant dense<0.000000e+00> : vector<8xf32>
    %55 = vector.multi_reduction <add>, %54, %cst_35 [1] : vector<8x3xf32> to vector<8xf32>
    %56 = vector.shape_cast %55 : vector<8xf32> to vector<8x1xf32>
    %57 = vector.broadcast %56 : vector<8x1xf32> to vector<8x3xf32>
    %58 = arith.divf %54, %57 : vector<8x3xf32>
    %c0_36 = arith.constant 0 : index
    %c0_37 = arith.constant 0 : index
    %59 = vector.load %arg14[%c0_36, %c0_37] : memref<3x384xf32, #tpu.memory_space<vmem>>, vector<3x384xf32>
    %cst_38 = arith.constant dense<0.000000e+00> : vector<8x384xf32>
    %60 = tpu.matmul %58, %59, %cst_38 {dimension_numbers = #tpu.dot_dimension_numbers<[1], [0], [0], [1], [0, 0, 1, 1], [], []>} : vector<8x3xf32>, vector<3x384xf32>, vector<8x384xf32> -> vector<8x384xf32>
    %61 = arith.mulf %44, %60 : vector<8x384xf32>
    %c0_39 = arith.constant 0 : index
    %c0_40 = arith.constant 0 : index
    %62 = vector.load %arg15[%c0_39, %c0_40] : memref<384x128xf32, #tpu.memory_space<vmem>>, vector<384x128xf32>
    %cst_41 = arith.constant dense<0.000000e+00> : vector<8x128xf32>
    %63 = tpu.matmul %61, %62, %cst_41 {dimension_numbers = #tpu.dot_dimension_numbers<[1], [0], [0], [1], [0, 0, 1, 1], [], []>} : vector<8x384xf32>, vector<384x128xf32>, vector<8x128xf32> -> vector<8x128xf32>
    %c0_42 = arith.constant 0 : index
    %c0_43 = arith.constant 0 : index
    %64 = vector.load %arg16[%c0_42, %c0_43] : memref<8x128xf32, #tpu.memory_space<vmem>>, vector<8x128xf32>
    tpu.vector_store %arg16[%c0_42, %c0_43], %63 {strides = array<i32>} : memref<8x128xf32, #tpu.memory_space<vmem>>, vector<8x128xf32>,
    %c0_44 = arith.constant 0 : index
    %c0_45 = arith.constant 0 : index
    %65 = vector.load %arg17[%c0_44, %c0_45] : memref<8x3xf32, #tpu.memory_space<vmem>>, vector<8x3xf32>
    tpu.vector_store %arg17[%c0_44, %c0_45], %58 {strides = array<i32>} : memref<8x3xf32, #tpu.memory_space<vmem>>, vector<8x3xf32>,
    return
  }
  func.func @transform_0(%arg0: i32) -> (i32, i32) {
    %c0_i32 = arith.constant 0 : i32
    %c0_i32_0 = arith.constant 0 : i32
    return %arg0, %c0_i32 : i32, i32
  }
  func.func @transform_1(%arg0: i32) -> (i32, i32) {
    %c0_i32 = arith.constant 0 : i32
    %c0_i32_0 = arith.constant 0 : i32
    %c0_i32_1 = arith.constant 0 : i32
    return %c0_i32, %c0_i32_0 : i32, i32
  }
  func.func @transform_2(%arg0: i32) -> (i32, i32) {
    %c0_i32 = arith.constant 0 : i32
    %c0_i32_0 = arith.constant 0 : i32
    %c0_i32_1 = arith.constant 0 : i32
    return %c0_i32, %c0_i32_0 : i32, i32
  }
  func.func @transform_3(%arg0: i32) -> (i32, i32) {
    %c0_i32 = arith.constant 0 : i32
    %c0_i32_0 = arith.constant 0 : i32
    %c0_i32_1 = arith.constant 0 : i32
    return %c0_i32, %c0_i32_0 : i32, i32
  }
  func.func @transform_4(%arg0: i32) -> (i32, i32) {
    %c0_i32 = arith.constant 0 : i32
    %c0_i32_0 = arith.constant 0 : i32
    %c0_i32_1 = arith.constant 0 : i32
    return %c0_i32, %c0_i32_0 : i32, i32
  }
  func.func @transform_5(%arg0: i32) -> (i32, i32) {
    %c0_i32 = arith.constant 0 : i32
    %c0_i32_0 = arith.constant 0 : i32
    %c0_i32_1 = arith.constant 0 : i32
    return %c0_i32, %c0_i32_0 : i32, i32
  }
  func.func @transform_6(%arg0: i32) -> (i32, i32) {
    %c0_i32 = arith.constant 0 : i32
    %c0_i32_0 = arith.constant 0 : i32
    %c0_i32_1 = arith.constant 0 : i32
    return %c0_i32, %c0_i32_0 : i32, i32
  }
  func.func @transform_7(%arg0: i32) -> (i32, i32) {
    %c0_i32 = arith.constant 0 : i32
    %c0_i32_0 = arith.constant 0 : i32
    %c0_i32_1 = arith.constant 0 : i32
    return %c0_i32, %c0_i32_0 : i32, i32
  }
  func.func @transform_8(%arg0: i32) -> (i32, i32) {
    %c0_i32 = arith.constant 0 : i32
    %c0_i32_0 = arith.constant 0 : i32
    %c0_i32_1 = arith.constant 0 : i32
    return %c0_i32, %c0_i32_0 : i32, i32
  }
  func.func @transform_9(%arg0: i32) -> (i32, i32) {
    %c0_i32 = arith.constant 0 : i32
    %c0_i32_0 = arith.constant 0 : i32
    %c0_i32_1 = arith.constant 0 : i32
    return %c0_i32, %c0_i32_0 : i32, i32
  }
  func.func @transform_10(%arg0: i32) -> (i32, i32) {
    %c0_i32 = arith.constant 0 : i32
    %c0_i32_0 = arith.constant 0 : i32
    %c0_i32_1 = arith.constant 0 : i32
    return %c0_i32, %c0_i32_0 : i32, i32
  }
  func.func @transform_11(%arg0: i32) -> (i32, i32) {
    %c0_i32 = arith.constant 0 : i32
    %c0_i32_0 = arith.constant 0 : i32
    %c0_i32_1 = arith.constant 0 : i32
    return %c0_i32, %c0_i32_0 : i32, i32
  }
  func.func @transform_12(%arg0: i32) -> (i32, i32) {
    %c0_i32 = arith.constant 0 : i32
    %c0_i32_0 = arith.constant 0 : i32
    %c0_i32_1 = arith.constant 0 : i32
    return %c0_i32, %c0_i32_0 : i32, i32
  }
  func.func @transform_13(%arg0: i32) -> (i32, i32) {
    %c0_i32 = arith.constant 0 : i32
    %c0_i32_0 = arith.constant 0 : i32
    %c0_i32_1 = arith.constant 0 : i32
    return %c0_i32, %c0_i32_0 : i32, i32
  }
  func.func @transform_14(%arg0: i32) -> (i32, i32) {
    %c0_i32 = arith.constant 0 : i32
    %c0_i32_0 = arith.constant 0 : i32
    %c0_i32_1 = arith.constant 0 : i32
    return %c0_i32, %c0_i32_0 : i32, i32
  }
  func.func @transform_15(%arg0: i32) -> (i32, i32) {
    %c0_i32 = arith.constant 0 : i32
    %c0_i32_0 = arith.constant 0 : i32
    return %arg0, %c0_i32 : i32, i32
  }
  func.func @transform_16(%arg0: i32) -> (i32, i32) {
    %c0_i32 = arith.constant 0 : i32
    %c0_i32_0 = arith.constant 0 : i32
    return %arg0, %c0_i32 : i32, i32
  }
}

module attributes {stable_mosaic.version = 11 : i64} {
  func.func @kernel(%arg0: i32, %arg1: memref<8x144xf32, #tpu.memory_space<vmem>>, %arg2: memref<1x144xf32, #tpu.memory_space<vmem>>, %arg3: memref<1x144xf32, #tpu.memory_space<vmem>>, %arg4: memref<144x3xf32, #tpu.memory_space<vmem>>, %arg5: memref<3x144xf32, #tpu.memory_space<vmem>>, %arg6: memref<144x96xbf16, #tpu.memory_space<vmem>>, %arg7: memref<1x96xf32, #tpu.memory_space<vmem>>, %arg8: memref<96x96xbf16, #tpu.memory_space<vmem>>, %arg9: memref<1x96xf32, #tpu.memory_space<vmem>>, %arg10: memref<96x3xf32, #tpu.memory_space<vmem>>, %arg11: memref<1x3xf32, #tpu.memory_space<vmem>>, %arg12: memref<96x384xbf16, #tpu.memory_space<vmem>>, %arg13: memref<1x384xf32, #tpu.memory_space<vmem>>, %arg14: memref<3x384xf32, #tpu.memory_space<vmem>>, %arg15: memref<384x128xf32, #tpu.memory_space<vmem>>, %arg16: memref<8x128xf32, #tpu.memory_space<vmem>>, %arg17: memref<8x3xf32, #tpu.memory_space<vmem>>) attributes {dimension_semantics = [#tpu.dimension_semantics<parallel>], iteration_bounds = array<i64: 1>, scalar_prefetch = 0 : i64, scratch_operands = 0 : i64, tpu.core_type = #tpu.core_type<tc>, window_params = [{transform_indices = @transform_0, window_bounds = array<i64: 8, 144>}, {pipeline_mode = #tpu.pipeline_mode<synchronous>, transform_indices = @transform_1, window_bounds = array<i64: 1, 144>}, {pipeline_mode = #tpu.pipeline_mode<synchronous>, transform_indices = @transform_2, window_bounds = array<i64: 1, 144>}, {pipeline_mode = #tpu.pipeline_mode<synchronous>, transform_indices = @transform_3, window_bounds = array<i64: 144, 3>}, {pipeline_mode = #tpu.pipeline_mode<synchronous>, transform_indices = @transform_4, window_bounds = array<i64: 3, 144>}, {pipeline_mode = #tpu.pipeline_mode<synchronous>, transform_indices = @transform_5, window_bounds = array<i64: 144, 96>}, {pipeline_mode = #tpu.pipeline_mode<synchronous>, transform_indices = @transform_6, window_bounds = array<i64: 1, 96>}, {pipeline_mode = #tpu.pipeline_mode<synchronous>, transform_indices = @transform_7, window_bounds = array<i64: 96, 96>}, {pipeline_mode = #tpu.pipeline_mode<synchronous>, transform_indices = @transform_8, window_bounds = array<i64: 1, 96>}, {pipeline_mode = #tpu.pipeline_mode<synchronous>, transform_indices = @transform_9, window_bounds = array<i64: 96, 3>}, {pipeline_mode = #tpu.pipeline_mode<synchronous>, transform_indices = @transform_10, window_bounds = array<i64: 1, 3>}, {pipeline_mode = #tpu.pipeline_mode<synchronous>, transform_indices = @transform_11, window_bounds = array<i64: 96, 384>}, {pipeline_mode = #tpu.pipeline_mode<synchronous>, transform_indices = @transform_12, window_bounds = array<i64: 1, 384>}, {pipeline_mode = #tpu.pipeline_mode<synchronous>, transform_indices = @transform_13, window_bounds = array<i64: 3, 384>}, {pipeline_mode = #tpu.pipeline_mode<synchronous>, transform_indices = @transform_14, window_bounds = array<i64: 384, 128>}, {transform_indices = @transform_15, window_bounds = array<i64: 8, 128>}, {transform_indices = @transform_16, window_bounds = array<i64: 8, 3>}]} {
    %c0 = arith.constant 0 : index
    %c0_0 = arith.constant 0 : index
    %0 = vector.load %arg1[%c0, %c0_0] : memref<8x144xf32, #tpu.memory_space<vmem>>, vector<8x144xf32>
    %c0_1 = arith.constant 0 : index
    %c0_2 = arith.constant 0 : index
    %1 = vector.load %arg4[%c0_1, %c0_2] : memref<144x3xf32, #tpu.memory_space<vmem>>, vector<144x3xf32>
    %c0_3 = arith.constant 0 : index
    %c0_4 = arith.constant 0 : index
    %2 = vector.load %arg5[%c0_3, %c0_4] : memref<3x144xf32, #tpu.memory_space<vmem>>, vector<3x144xf32>
    %cst = arith.constant dense<0.000000e+00> : vector<8x3xf32>
    %3 = tpu.matmul %0, %1, %cst {dimension_numbers = #tpu.dot_dimension_numbers<[1], [0], [0], [1], [0, 0, 1, 1], [], []>} : vector<8x144xf32>, vector<144x3xf32>, vector<8x3xf32> -> vector<8x3xf32>
    %4 = arith.mulf %0, %0 : vector<8x144xf32>
    %cst_5 = arith.constant dense<0.000000e+00> : vector<8x3xf32>
    %5 = tpu.matmul %4, %1, %cst_5 {dimension_numbers = #tpu.dot_dimension_numbers<[1], [0], [0], [1], [0, 0, 1, 1], [], []>} : vector<8x144xf32>, vector<144x3xf32>, vector<8x3xf32> -> vector<8x3xf32>
    %6 = arith.mulf %3, %3 : vector<8x3xf32>
    %7 = arith.subf %5, %6 : vector<8x3xf32>
    %cst_6 = arith.constant 9.99999974E-6 : f32
    %8 = vector.broadcast %cst_6 : f32 to vector<8x3xf32>
    %9 = arith.addf %7, %8 : vector<8x3xf32>
    %10 = math.rsqrt %9 : vector<8x3xf32>
    %cst_7 = arith.constant dense<0.000000e+00> : vector<8x144xf32>
    %11 = tpu.matmul %3, %2, %cst_7 {dimension_numbers = #tpu.dot_dimension_numbers<[1], [0], [0], [1], [0, 0, 1, 1], [], []>} : vector<8x3xf32>, vector<3x144xf32>, vector<8x144xf32> -> vector<8x144xf32>
    %cst_8 = arith.constant dense<0.000000e+00> : vector<8x144xf32>
    %12 = tpu.matmul %10, %2, %cst_8 {dimension_numbers = #tpu.dot_dimension_numbers<[1], [0], [0], [1], [0, 0, 1, 1], [], []>} : vector<8x3xf32>, vector<3x144xf32>, vector<8x144xf32> -> vector<8x144xf32>
    %13 = arith.subf %0, %11 : vector<8x144xf32>
    %14 = arith.mulf %13, %12 : vector<8x144xf32>
    %c0_9 = arith.constant 0 : index
    %c0_10 = arith.constant 0 : index
    %15 = vector.load %arg2[%c0_9, %c0_10] : memref<1x144xf32, #tpu.memory_space<vmem>>, vector<1x144xf32>
    %16 = vector.broadcast %15 : vector<1x144xf32> to vector<8x144xf32>
    %17 = arith.mulf %14, %16 : vector<8x144xf32>
    %c0_11 = arith.constant 0 : index
    %c0_12 = arith.constant 0 : index
    %18 = vector.load %arg3[%c0_11, %c0_12] : memref<1x144xf32, #tpu.memory_space<vmem>>, vector<1x144xf32>
    %19 = vector.broadcast %18 : vector<1x144xf32> to vector<8x144xf32>
    %20 = arith.addf %17, %19 : vector<8x144xf32>
    %c0_13 = arith.constant 0 : index
    %c0_14 = arith.constant 0 : index
    %21 = vector.load %arg6[%c0_13, %c0_14] : memref<144x96xbf16, #tpu.memory_space<vmem>>, vector<144x96xbf16>
    %22 = arith.truncf %20 : vector<8x144xf32> to vector<8x144xbf16>
    %cst_15 = arith.constant dense<0.000000e+00> : vector<8x96xf32>
    %23 = tpu.matmul %22, %21, %cst_15 {dimension_numbers = #tpu.dot_dimension_numbers<[1], [0], [0], [1], [0, 0, 1, 1], [], []>} : vector<8x144xbf16>, vector<144x96xbf16>, vector<8x96xf32> -> vector<8x96xf32>
    %c0_16 = arith.constant 0 : index
    %c0_17 = arith.constant 0 : index
    %24 = vector.load %arg7[%c0_16, %c0_17] : memref<1x96xf32, #tpu.memory_space<vmem>>, vector<1x96xf32>
    %25 = vector.broadcast %24 : vector<1x96xf32> to vector<8x96xf32>
    %26 = arith.addf %23, %25 : vector<8x96xf32>
    %27 = arith.negf %26 : vector<8x96xf32>
    %28 = math.exp %27 : vector<8x96xf32>
    %cst_18 = arith.constant 1.000000e+00 : f32
    %29 = vector.broadcast %cst_18 : f32 to vector<8x96xf32>
    %30 = arith.addf %29, %28 : vector<8x96xf32>
    %31 = arith.divf %29, %30 : vector<8x96xf32>
    %32 = arith.mulf %26, %31 : vector<8x96xf32>
    %c0_19 = arith.constant 0 : index
    %c0_20 = arith.constant 0 : index
    %33 = vector.load %arg8[%c0_19, %c0_20] : memref<96x96xbf16, #tpu.memory_space<vmem>>, vector<96x96xbf16>
    %34 = arith.truncf %32 : vector<8x96xf32> to vector<8x96xbf16>
    %cst_21 = arith.constant dense<0.000000e+00> : vector<8x96xf32>
    %35 = tpu.matmul %34, %33, %cst_21 {dimension_numbers = #tpu.dot_dimension_numbers<[1], [0], [0], [1], [0, 0, 1, 1], [], []>} : vector<8x96xbf16>, vector<96x96xbf16>, vector<8x96xf32> -> vector<8x96xf32>
    %c0_22 = arith.constant 0 : index
    %c0_23 = arith.constant 0 : index
    %36 = vector.load %arg9[%c0_22, %c0_23] : memref<1x96xf32, #tpu.memory_space<vmem>>, vector<1x96xf32>
    %37 = vector.broadcast %36 : vector<1x96xf32> to vector<8x96xf32>
    %38 = arith.addf %35, %37 : vector<8x96xf32>
    %c0_24 = arith.constant 0 : index
    %c0_25 = arith.constant 0 : index
    %39 = vector.load %arg12[%c0_24, %c0_25] : memref<96x384xbf16, #tpu.memory_space<vmem>>, vector<96x384xbf16>
    %40 = arith.truncf %38 : vector<8x96xf32> to vector<8x96xbf16>
    %cst_26 = arith.constant dense<0.000000e+00> : vector<8x384xf32>
    %41 = tpu.matmul %40, %39, %cst_26 {dimension_numbers = #tpu.dot_dimension_numbers<[1], [0], [0], [1], [0, 0, 1, 1], [], []>} : vector<8x96xbf16>, vector<96x384xbf16>, vector<8x384xf32> -> vector<8x384xf32>
    %c0_27 = arith.constant 0 : index
    %c0_28 = arith.constant 0 : index
    %42 = vector.load %arg13[%c0_27, %c0_28] : memref<1x384xf32, #tpu.memory_space<vmem>>, vector<1x384xf32>
    %43 = vector.broadcast %42 : vector<1x384xf32> to vector<8x384xf32>
    %44 = arith.addf %41, %43 : vector<8x384xf32>
    %c0_29 = arith.constant 0 : index
    %c0_30 = arith.constant 0 : index
    %45 = vector.load %arg10[%c0_29, %c0_30] : memref<96x3xf32, #tpu.memory_space<vmem>>, vector<96x3xf32>
    %cst_31 = arith.constant dense<0.000000e+00> : vector<8x3xf32>
    %46 = tpu.matmul %38, %45, %cst_31 {dimension_numbers = #tpu.dot_dimension_numbers<[1], [0], [0], [1], [0, 0, 1, 1], [], []>} : vector<8x96xf32>, vector<96x3xf32>, vector<8x3xf32> -> vector<8x3xf32>
    %c0_32 = arith.constant 0 : index
    %c0_33 = arith.constant 0 : index
    %47 = vector.load %arg11[%c0_32, %c0_33] : memref<1x3xf32, #tpu.memory_space<vmem>>, vector<1x3xf32>
    %48 = vector.broadcast %47 : vector<1x3xf32> to vector<8x3xf32>
    %49 = arith.addf %46, %48 : vector<8x3xf32>
    %cst_34 = arith.constant dense<0xFF800000> : vector<8xf32>
    %50 = vector.multi_reduction <maximumf>, %49, %cst_34 [1] : vector<8x3xf32> to vector<8xf32>
    %51 = vector.shape_cast %50 : vector<8xf32> to vector<8x1xf32>
    %52 = vector.broadcast %51 : vector<8x1xf32> to vector<8x3xf32>
    %53 = arith.subf %49, %52 : vector<8x3xf32>
    %54 = math.exp %53 : vector<8x3xf32>
    %cst_35 = arith.constant dense<0.000000e+00> : vector<8xf32>
    %55 = vector.multi_reduction <add>, %54, %cst_35 [1] : vector<8x3xf32> to vector<8xf32>
    %56 = vector.shape_cast %55 : vector<8xf32> to vector<8x1xf32>
    %57 = vector.broadcast %56 : vector<8x1xf32> to vector<8x3xf32>
    %58 = arith.divf %54, %57 : vector<8x3xf32>
    %c0_36 = arith.constant 0 : index
    %c0_37 = arith.constant 0 : index
    %59 = vector.load %arg14[%c0_36, %c0_37] : memref<3x384xf32, #tpu.memory_space<vmem>>, vector<3x384xf32>
    %cst_38 = arith.constant dense<0.000000e+00> : vector<8x384xf32>
    %60 = tpu.matmul %58, %59, %cst_38 {dimension_numbers = #tpu.dot_dimension_numbers<[1], [0], [0], [1], [0, 0, 1, 1], [], []>} : vector<8x3xf32>, vector<3x384xf32>, vector<8x384xf32> -> vector<8x384xf32>
    %61 = arith.mulf %44, %60 : vector<8x384xf32>
    %c0_39 = arith.constant 0 : index
    %c0_40 = arith.constant 0 : index
    %62 = vector.load %arg15[%c0_39, %c0_40] : memref<384x128xf32, #tpu.memory_space<vmem>>, vector<384x128xf32>
    %cst_41 = arith.constant dense<0.000000e+00> : vector<8x128xf32>
    %63 = tpu.matmul %61, %62, %cst_41 {dimension_numbers = #tpu.dot_dimension_numbers<[1], [0], [0], [1], [0, 0, 1, 1], [], []>} : vector<8x384xf32>, vector<384x128xf32>, vector<8x128xf32> -> vector<8x128xf32>
    %c0_42 = arith.constant 0 : index
    %c0_43 = arith.constant 0 : index
    %64 = vector.load %arg16[%c0_42, %c0_43] : memref<8x128xf32, #tpu.memory_space<vmem>>, vector<8x128xf32>
    tpu.vector_store %arg16[%c0_42, %c0_43], %63 {strides = array<i32>} : memref<8x128xf32, #tpu.memory_space<vmem>>, vector<8x128xf32>,
    %c0_44 = arith.constant 0 : index
    %c0_45 = arith.constant 0 : index
    %65 = vector.load %arg17[%c0_44, %c0_45] : memref<8x3xf32, #tpu.memory_space<vmem>>, vector<8x3xf32>
    tpu.vector_store %arg17[%c0_44, %c0_45], %58 {strides = array<i32>} : memref<8x3xf32, #tpu.memory_space<vmem>>, vector<8x3xf32>,
    return
  }
  func.func @transform_0(%arg0: i32) -> (i32, i32) {
    %c0_i32 = arith.constant 0 : i32
    %c0_i32_0 = arith.constant 0 : i32
    return %arg0, %c0_i32 : i32, i32
  }
  func.func @transform_1(%arg0: i32) -> (i32, i32) {
    %c0_i32 = arith.constant 0 : i32
    %c0_i32_0 = arith.constant 0 : i32
    %c0_i32_1 = arith.constant 0 : i32
    return %c0_i32, %c0_i32_0 : i32, i32
  }
  func.func @transform_2(%arg0: i32) -> (i32, i32) {
    %c0_i32 = arith.constant 0 : i32
    %c0_i32_0 = arith.constant 0 : i32
    %c0_i32_1 = arith.constant 0 : i32
    return %c0_i32, %c0_i32_0 : i32, i32
  }
  func.func @transform_3(%arg0: i32) -> (i32, i32) {
    %c0_i32 = arith.constant 0 : i32
    %c0_i32_0 = arith.constant 0 : i32
    %c0_i32_1 = arith.constant 0 : i32
    return %c0_i32, %c0_i32_0 : i32, i32
  }
  func.func @transform_4(%arg0: i32) -> (i32, i32) {
    %c0_i32 = arith.constant 0 : i32
    %c0_i32_0 = arith.constant 0 : i32
    %c0_i32_1 = arith.constant 0 : i32
    return %c0_i32, %c0_i32_0 : i32, i32
  }
  func.func @transform_5(%arg0: i32) -> (i32, i32) {
    %c0_i32 = arith.constant 0 : i32
    %c0_i32_0 = arith.constant 0 : i32
    %c0_i32_1 = arith.constant 0 : i32
    return %c0_i32, %c0_i32_0 : i32, i32
  }
  func.func @transform_6(%arg0: i32) -> (i32, i32) {
    %c0_i32 = arith.constant 0 : i32
    %c0_i32_0 = arith.constant 0 : i32
    %c0_i32_1 = arith.constant 0 : i32
    return %c0_i32, %c0_i32_0 : i32, i32
  }
  func.func @transform_7(%arg0: i32) -> (i32, i32) {
    %c0_i32 = arith.constant 0 : i32
    %c0_i32_0 = arith.constant 0 : i32
    %c0_i32_1 = arith.constant 0 : i32
    return %c0_i32, %c0_i32_0 : i32, i32
  }
  func.func @transform_8(%arg0: i32) -> (i32, i32) {
    %c0_i32 = arith.constant 0 : i32
    %c0_i32_0 = arith.constant 0 : i32
    %c0_i32_1 = arith.constant 0 : i32
    return %c0_i32, %c0_i32_0 : i32, i32
  }
  func.func @transform_9(%arg0: i32) -> (i32, i32) {
    %c0_i32 = arith.constant 0 : i32
    %c0_i32_0 = arith.constant 0 : i32
    %c0_i32_1 = arith.constant 0 : i32
    return %c0_i32, %c0_i32_0 : i32, i32
  }
  func.func @transform_10(%arg0: i32) -> (i32, i32) {
    %c0_i32 = arith.constant 0 : i32
    %c0_i32_0 = arith.constant 0 : i32
    %c0_i32_1 = arith.constant 0 : i32
    return %c0_i32, %c0_i32_0 : i32, i32
  }
  func.func @transform_11(%arg0: i32) -> (i32, i32) {
    %c0_i32 = arith.constant 0 : i32
    %c0_i32_0 = arith.constant 0 : i32
    %c0_i32_1 = arith.constant 0 : i32
    return %c0_i32, %c0_i32_0 : i32, i32
  }
  func.func @transform_12(%arg0: i32) -> (i32, i32) {
    %c0_i32 = arith.constant 0 : i32
    %c0_i32_0 = arith.constant 0 : i32
    %c0_i32_1 = arith.constant 0 : i32
    return %c0_i32, %c0_i32_0 : i32, i32
  }
  func.func @transform_13(%arg0: i32) -> (i32, i32) {
    %c0_i32 = arith.constant 0 : i32
    %c0_i32_0 = arith.constant 0 : i32
    %c0_i32_1 = arith.constant 0 : i32
    return %c0_i32, %c0_i32_0 : i32, i32
  }
  func.func @transform_14(%arg0: i32) -> (i32, i32) {
    %c0_i32 = arith.constant 0 : i32
    %c0_i32_0 = arith.constant 0 : i32
    %c0_i32_1 = arith.constant 0 : i32
    return %c0_i32, %c0_i32_0 : i32, i32
  }
  func.func @transform_15(%arg0: i32) -> (i32, i32) {
    %c0_i32 = arith.constant 0 : i32
    %c0_i32_0 = arith.constant 0 : i32
    return %arg0, %c0_i32 : i32, i32
  }
  func.func @transform_16(%arg0: i32) -> (i32, i32) {
    %c0_i32 = arith.constant 0 : i32
    %c0_i32_0 = arith.constant 0 : i32
    return %arg0, %c0_i32 : i32, i32
  }
}

</mosaic_0001>

<llo_original>
// kernel: tpu_custom_call.1
$region0: #{tpu_custom_call.1}
  #allocation0 [shape = 'u32[]', space=smem, size = 0x4, offset = 0x4, fixed_abs, tag = 'smem constant byte address 0x4 - core index']
  #allocation1 [shape = 'u32[72,128]{1,0:T(1,128)}', space=vmem, size = 0x9000, scoped, tag = 'internal scratch']
  %s0 = inlined_call_operand.vmem [shape: f32[8,144], index: 0, kind: input, shape index: {}]
  %s1 = inlined_call_operand.hbm [shape: f32[1,144], index: 1, kind: input, shape index: {}]
  %s2 = inlined_call_operand.hbm [shape: f32[1,144], index: 2, kind: input, shape index: {}]
  %s3 = inlined_call_operand.vmem [shape: f32[144,3], index: 3, kind: input, shape index: {}]
  %s4 = inlined_call_operand.hbm [shape: f32[3,144], index: 4, kind: input, shape index: {}]
  %s5 = inlined_call_operand.vmem [shape: bf16[144,96], index: 5, kind: input, shape index: {}]
  %s6 = inlined_call_operand.hbm [shape: f32[1,96], index: 6, kind: input, shape index: {}]
  %s7 = inlined_call_operand.hbm [shape: bf16[96,96], index: 7, kind: input, shape index: {}]
  %s8 = inlined_call_operand.hbm [shape: f32[1,96], index: 8, kind: input, shape index: {}]
  %s9 = inlined_call_operand.vmem [shape: f32[96,3], index: 9, kind: input, shape index: {}]
  %s10 = inlined_call_operand.vmem [shape: f32[1,3], index: 10, kind: input, shape index: {}]
  %s11 = inlined_call_operand.vmem [shape: bf16[96,384], index: 11, kind: input, shape index: {}]
  %s12 = inlined_call_operand.vmem [shape: f32[1,384], index: 12, kind: input, shape index: {}]
  %s13 = inlined_call_operand.vmem [shape: f32[3,384], index: 13, kind: input, shape index: {}]
  %s14 = inlined_call_operand.hbm [shape: f32[384,128], index: 14, kind: input, shape index: {}]
  %s15 = inlined_call_operand.hbm [shape: f32[8,128], index: 15, kind: output, shape index: {0}]
  %s16 = inlined_call_operand.vmem [shape: f32[8,3], index: 16, kind: output, shape index: {1}]
  %17 = xla_tuple %s15, %s16
  %s18 = sld [smem:[#allocation0]]
  $region106: #{tpu_custom_call.1} parent=0
    _
  %s20 = ssub.s32 1, %s18
  %s21 = scalar_select 0, %s20, %s18
  $region1: #{tpu_custom_call.1} parent=0
    #allocation2 [shape = 'u8[1024]{0}', space=vmem, size = 0x400, scoped, tag = 'input window, operand 1, single buffered']
    #allocation3 [shape = 's32[1]{0}', space=sflag, size = 0x4, scoped, tag = 'scoped memory for tpu_custom_call.1']
    #allocation4 [shape = 's32[1]{0}', space=sflag, size = 0x4, scoped, tag = 'scoped memory for tpu_custom_call.1']
    #allocation5 [shape = 'u8[1024]{0}', space=vmem, size = 0x400, scoped, tag = 'input window, operand 2, single buffered']
    #allocation6 [shape = 's32[1]{0}', space=sflag, size = 0x4, scoped, tag = 'scoped memory for tpu_custom_call.1']
    #allocation7 [shape = 'u8[4096]{0}', space=vmem, size = 0x1000, scoped, tag = 'input window, operand 4, single buffered']
    #allocation8 [shape = 'u8[512]{0}', space=vmem, size = 0x400, scoped, tag = 'input window, operand 6, single buffered']
    #allocation9 [shape = 's32[1]{0}', space=sflag, size = 0x4, scoped, tag = 'scoped memory for tpu_custom_call.1']
    #allocation10 [shape = 'u8[24576]{0}', space=vmem, size = 0x6000, scoped, tag = 'input window, operand 7, single buffered']
    #allocation11 [shape = 'u8[512]{0}', space=vmem, size = 0x400, scoped, tag = 'input window, operand 8, single buffered']
    #allocation12 [shape = 's32[1]{0}', space=sflag, size = 0x4, scoped, tag = 'scoped memory for tpu_custom_call.1']
    #allocation13 [shape = 'u8[196608]{0}', space=vmem, size = 0x30000, scoped, tag = 'input window, operand 14, single buffered']
    #allocation14 [shape = 'u8[4096]{0}', space=vmem, size = 0x1000, scoped, tag = 'output window, operand 0, single buffered']
    %22 = vsyncpa [#allocation3], 0
    %23 = vsyncpa [#allocation6], 0
    %24 = vsyncpa [#allocation9], 0
    %25 = vsyncpa [#allocation12], 0
    %26 = vsyncpa [#allocation4], 0
    // Predicated region
    $region2: #{tpu_custom_call.1} parent=1 // pred_check
      _
    $region3: #{tpu_custom_call.1} parent=1 // pred_check_branch
      %28 = sbr.rel (0) target = $region5
    $region4: #{tpu_custom_call.1} parent=1 // pred_region
      _
    $region5: #{tpu_custom_call.1} parent=1 // pred_fallthru
      _
    // Predicated region
    $region6: #{tpu_custom_call.1} parent=1 // pred_check
      _
    $region7: #{tpu_custom_call.1} parent=1 // pred_check_branch
      %30 = sbr.rel (0) target = $region9
    $region8: #{tpu_custom_call.1} parent=1 // pred_region
      %32 = vsyncadd [#allocation3], 0
      %s34 = sshll.u32 %s1, 4
      %s35 = int_to_ptr.hbm [resolvable:$true] %s34
      %s36 = sshll.u32 [#allocation2], 4
      %s37 = int_to_ptr.vmem [resolvable:$true] %s36
      %39 = dma.hbm_to_vmem [thread:$0]  %s35, 32, %s37, [#allocation3]
    $region9: #{tpu_custom_call.1} parent=1 // pred_fallthru
      _
    // Predicated region
    $region10: #{tpu_custom_call.1} parent=1 // pred_check
      _
    $region11: #{tpu_custom_call.1} parent=1 // pred_check_branch
      %41 = sbr.rel (0) target = $region13
    $region12: #{tpu_custom_call.1} parent=1 // pred_region
      %43 = vsyncadd [#allocation6], 0
      %s45 = sshll.u32 %s2, 4
      %s46 = int_to_ptr.hbm [resolvable:$true] %s45
      %s47 = sshll.u32 [#allocation5], 4
      %s48 = int_to_ptr.vmem [resolvable:$true] %s47
      %50 = dma.hbm_to_vmem [thread:$0]  %s46, 32, %s48, [#allocation6]
    $region13: #{tpu_custom_call.1} parent=1 // pred_fallthru
      _
    // Predicated region
    $region14: #{tpu_custom_call.1} parent=1 // pred_check
      _
    $region15: #{tpu_custom_call.1} parent=1 // pred_check_branch
      %52 = sbr.rel (0) target = $region17
    $region16: #{tpu_custom_call.1} parent=1 // pred_region
      _
    $region17: #{tpu_custom_call.1} parent=1 // pred_fallthru
      _
    // Predicated region
    $region18: #{tpu_custom_call.1} parent=1 // pred_check
      _
    $region19: #{tpu_custom_call.1} parent=1 // pred_check_branch
      %54 = sbr.rel (0) target = $region21
    $region20: #{tpu_custom_call.1} parent=1 // pred_region
      %56 = vsyncadd [#allocation6], 0
      %s58 = sshll.u32 %s4, 4
      %s59 = int_to_ptr.hbm [resolvable:$true] %s58
      %s60 = sshll.u32 [#allocation7], 4
      %s61 = int_to_ptr.vmem [resolvable:$true] %s60
      %63 = dma.hbm_to_vmem [thread:$0]  %s59, 128, %s61, [#allocation6]
    $region21: #{tpu_custom_call.1} parent=1 // pred_fallthru
      _
    // Predicated region
    $region22: #{tpu_custom_call.1} parent=1 // pred_check
      _
    $region23: #{tpu_custom_call.1} parent=1 // pred_check_branch
      %65 = sbr.rel (0) target = $region25
    $region24: #{tpu_custom_call.1} parent=1 // pred_region
      _
    $region25: #{tpu_custom_call.1} parent=1 // pred_fallthru
      _
    // Predicated region
    $region26: #{tpu_custom_call.1} parent=1 // pred_check
      _
    $region27: #{tpu_custom_call.1} parent=1 // pred_check_branch
      %67 = sbr.rel (0) target = $region29
    $region28: #{tpu_custom_call.1} parent=1 // pred_region
      %69 = vsyncadd [#allocation9], 0
      %s71 = sshll.u32 %s6, 4
      %s72 = int_to_ptr.hbm [resolvable:$true] %s71
      %s73 = sshll.u32 [#allocation8], 4
      %s74 = int_to_ptr.vmem [resolvable:$true] %s73
      %76 = dma.hbm_to_vmem [thread:$0]  %s72, 16, %s74, [#allocation9]
    $region29: #{tpu_custom_call.1} parent=1 // pred_fallthru
      _
    // Predicated region
    $region30: #{tpu_custom_call.1} parent=1 // pred_check
      _
    $region31: #{tpu_custom_call.1} parent=1 // pred_check_branch
      %78 = sbr.rel (0) target = $region33
    $region32: #{tpu_custom_call.1} parent=1 // pred_region
      %80 = vsyncadd [#allocation9], 0
      %s81 = sshll.u32 %s7, 4
      %s82 = int_to_ptr.hbm [resolvable:$true] %s81
      %s83 = sshll.u32 [#allocation10], 4
      %s84 = int_to_ptr.vmem [resolvable:$true] %s83
      %89 = dma.hbm_to_vmem [thread:$0]  %s82, 768, %s84, [#allocation9], 64, 64, 4
    $region33: #{tpu_custom_call.1} parent=1 // pred_fallthru
      _
    // Predicated region
    $region34: #{tpu_custom_call.1} parent=1 // pred_check
      _
    $region35: #{tpu_custom_call.1} parent=1 // pred_check_branch
      %91 = sbr.rel (0) target = $region37
    $region36: #{tpu_custom_call.1} parent=1 // pred_region
      %93 = vsyncadd [#allocation12], 0
      %s95 = sshll.u32 %s8, 4
      %s96 = int_to_ptr.hbm [resolvable:$true] %s95
      %s97 = sshll.u32 [#allocation11], 4
      %s98 = int_to_ptr.vmem [resolvable:$true] %s97
      %100 = dma.hbm_to_vmem [thread:$0]  %s96, 16, %s98, [#allocation12]
    $region37: #{tpu_custom_call.1} parent=1 // pred_fallthru
      _
    // Predicated region
    $region38: #{tpu_custom_call.1} parent=1 // pred_check
      _
    $region39: #{tpu_custom_call.1} parent=1 // pred_check_branch
      %102 = sbr.rel (0) target = $region41
    $region40: #{tpu_custom_call.1} parent=1 // pred_region
      _
    $region41: #{tpu_custom_call.1} parent=1 // pred_fallthru
      _
    // Predicated region
    $region42: #{tpu_custom_call.1} parent=1 // pred_check
      _
    $region43: #{tpu_custom_call.1} parent=1 // pred_check_branch
      %104 = sbr.rel (0) target = $region45
    $region44: #{tpu_custom_call.1} parent=1 // pred_region
      _
    $region45: #{tpu_custom_call.1} parent=1 // pred_fallthru
      _
    // Predicated region
    $region46: #{tpu_custom_call.1} parent=1 // pred_check
      _
    $region47: #{tpu_custom_call.1} parent=1 // pred_check_branch
      %106 = sbr.rel (0) target = $region49
    $region48: #{tpu_custom_call.1} parent=1 // pred_region
      _
    $region49: #{tpu_custom_call.1} parent=1 // pred_fallthru
      _
    // Predicated region
    $region50: #{tpu_custom_call.1} parent=1 // pred_check
      _
    $region51: #{tpu_custom_call.1} parent=1 // pred_check_branch
      %108 = sbr.rel (0) target = $region53
    $region52: #{tpu_custom_call.1} parent=1 // pred_region
      _
    $region53: #{tpu_custom_call.1} parent=1 // pred_fallthru
      _
    // Predicated region
    $region54: #{tpu_custom_call.1} parent=1 // pred_check
      _
    $region55: #{tpu_custom_call.1} parent=1 // pred_check_branch
      %110 = sbr.rel (0) target = $region57
    $region56: #{tpu_custom_call.1} parent=1 // pred_region
      _
    $region57: #{tpu_custom_call.1} parent=1 // pred_fallthru
      _
    // Predicated region
    $region58: #{tpu_custom_call.1} parent=1 // pred_check
      _
    $region59: #{tpu_custom_call.1} parent=1 // pred_check_branch
      %112 = sbr.rel (0) target = $region61
    $region60: #{tpu_custom_call.1} parent=1 // pred_region
      %114 = vsyncadd [#allocation12], 0
      %s115 = sshll.u32 %s14, 4
      %s116 = int_to_ptr.hbm [resolvable:$true] %s115
      %s117 = sshll.u32 [#allocation13], 4
      %s118 = int_to_ptr.vmem [resolvable:$true] %s117
      %123 = dma.hbm_to_vmem [thread:$0]  %s116, 6144, %s118, [#allocation12], 128, 128, 8
    $region61: #{tpu_custom_call.1} parent=1 // pred_fallthru
      _
    // Predicated region
    $region62: #{tpu_custom_call.1} parent=1 // pred_check
      _
    $region63: #{tpu_custom_call.1} parent=1 // pred_check_branch
      %125 = sbr.rel (0) target = $region65
    $region64: #{tpu_custom_call.1} parent=1 // pred_region
      %127 = dma.done [#allocation3], 32
    $region65: #{tpu_custom_call.1} parent=1 // pred_fallthru
      _
    // Predicated region
    $region66: #{tpu_custom_call.1} parent=1 // pred_check
      _
    $region67: #{tpu_custom_call.1} parent=1 // pred_check_branch
      %129 = sbr.rel (0) target = $region69
    $region68: #{tpu_custom_call.1} parent=1 // pred_region
      %131 = dma.done [#allocation6], 32
    $region69: #{tpu_custom_call.1} parent=1 // pred_fallthru
      _
    // Predicated region
    $region70: #{tpu_custom_call.1} parent=1 // pred_check
      _
    $region71: #{tpu_custom_call.1} parent=1 // pred_check_branch
      %133 = sbr.rel (0) target = $region73
    $region72: #{tpu_custom_call.1} parent=1 // pred_region
      %135 = dma.done [#allocation6], 128
    $region73: #{tpu_custom_call.1} parent=1 // pred_fallthru
      _
    // Predicated region
    $region74: #{tpu_custom_call.1} parent=1 // pred_check
      _
    $region75: #{tpu_custom_call.1} parent=1 // pred_check_branch
      %137 = sbr.rel (0) target = $region77
    $region76: #{tpu_custom_call.1} parent=1 // pred_region
      %139 = dma.done [#allocation9], 16
    $region77: #{tpu_custom_call.1} parent=1 // pred_fallthru
      _
    // Predicated region
    $region78: #{tpu_custom_call.1} parent=1 // pred_check
      _
    $region79: #{tpu_custom_call.1} parent=1 // pred_check_branch
      %141 = sbr.rel (0) target = $region81
    $region80: #{tpu_custom_call.1} parent=1 // pred_region
      %143 = dma.done [#allocation9], 768
    $region81: #{tpu_custom_call.1} parent=1 // pred_fallthru
      _
    // Predicated region
    $region82: #{tpu_custom_call.1} parent=1 // pred_check
      _
    $region83: #{tpu_custom_call.1} parent=1 // pred_check_branch
      %145 = sbr.rel (0) target = $region85
    $region84: #{tpu_custom_call.1} parent=1 // pred_region
      %147 = dma.done [#allocation12], 16
    $region85: #{tpu_custom_call.1} parent=1 // pred_fallthru
      _
    // Predicated region
    $region86: #{tpu_custom_call.1} parent=1 // pred_check
      _
    $region87: #{tpu_custom_call.1} parent=1 // pred_check_branch
      %149 = sbr.rel (0) target = $region89
    $region88: #{tpu_custom_call.1} parent=1 // pred_region
      %151 = dma.done [#allocation12], 6144
    $region89: #{tpu_custom_call.1} parent=1 // pred_fallthru
      _
    %v153 = vld [vmem:[%s0] sm:$0xff]
    %v154 = vld [vmem:[%s0 + $0x8] sm:$0xff]
    %v155 = vld [vmem:[%s3] sm:$0xff]
    %v156 = vld [vmem:[%s3 + $0x8] sm:$0xff]
    %v157 = vld [vmem:[%s3 + $0x10] sm:$0xff]
    %v158 = vld [vmem:[%s3 + $0x18] sm:$0xff]
    %v159 = vld [vmem:[%s3 + $0x20] sm:$0xff]
    %v160 = vld [vmem:[%s3 + $0x28] sm:$0xff]
    %v161 = vld [vmem:[%s3 + $0x30] sm:$0xff]
    %v162 = vld [vmem:[%s3 + $0x38] sm:$0xff]
    %v163 = vld [vmem:[%s3 + $0x40] sm:$0xff]
    %v164 = vld [vmem:[%s3 + $0x48] sm:$0xff]
    %v165 = vld [vmem:[%s3 + $0x50] sm:$0xff]
    %v166 = vld [vmem:[%s3 + $0x58] sm:$0xff]
    %v167 = vld [vmem:[%s3 + $0x60] sm:$0xff]
    %v168 = vld [vmem:[%s3 + $0x68] sm:$0xff]
    %v169 = vld [vmem:[%s3 + $0x70] sm:$0xff]
    %v170 = vld [vmem:[%s3 + $0x78] sm:$0xff]
    %v171 = vld [vmem:[%s3 + $0x80] sm:$0xff]
    %v172 = vld [vmem:[%s3 + $0x88] sm:$0xff]
    %v173 = vld [vmem:[#allocation7] sm:$0x77]
    %vm174 = vcmask 130048
    %v176 = vsel %vm174, %v154, 0
    %178 = vmatpush.msra.mxu0 %v170
    %179 = vmatpush.msra.mxu0 %v169
    %180 = vmatpush.msra.mxu0 %v168
    %181 = vmatpush.msra.mxu0 %v167
    %182 = vmatpush.msra.mxu0 %v166
    %183 = vmatpush.msra.mxu0 %v165
    %184 = vmatpush.msra.mxu0 %v164
    %185 = vmatpush.msra.mxu0 %v163
    %186 = vmatpush.msra.mxu0 %v162
    %187 = vmatpush.msra.mxu0 %v161
    %188 = vmatpush.msra.mxu0 %v160
    %189 = vmatpush.msra.mxu0 %v159
    %190 = vmatpush.msra.mxu0 %v158
    %191 = vmatpush.msra.mxu0 %v157
    %192 = vmatpush.msra.mxu0 %v156
    %193 = vmatpush.msra.mxu0 %v155
    %194 = vmatmul.f32.gmra.mxu0 %v153
    %v195 = vpop.f32.mrf.mxu0
    %v196 = vadd.f32 0.0, %v195
    %197 = vdwg.mxu0
    %198 = vmatpush.msra.mxu0 0.0
    %199 = vmatpush.msra.mxu0 0.0
    %200 = vmatpush.msra.mxu0 0.0
    %201 = vmatpush.msra.mxu0 0.0
    %202 = vmatpush.msra.mxu0 0.0
    %203 = vmatpush.msra.mxu0 0.0
    %204 = vmatpush.msra.mxu0 0.0
    %205 = vmatpush.msra.mxu0 0.0
    %206 = vmatpush.msra.mxu0 0.0
    %207 = vmatpush.msra.mxu0 0.0
    %208 = vmatpush.msra.mxu0 0.0
    %209 = vmatpush.msra.mxu0 0.0
    %210 = vmatpush.msra.mxu0 0.0
    %211 = vmatpush.msra.mxu0 0.0
    %212 = vmatpush.msra.mxu0 %v172
    %213 = vmatpush.msra.mxu0 %v171
    %214 = vmatmul.f32.gmra.mxu0 %v176
    %v215 = vpop.f32.mrf.mxu0
    %v216 = vadd.f32 %v196, %v215
    %217 = vdwg.mxu0
    %v218 = vmul.f32 %v153, %v153
    %v219 = vmul.f32 %v154, %v154
    %v221 = vsel %vm174, %v219, 0
    %223 = vmatpush.msra.mxu0 %v170
    %224 = vmatpush.msra.mxu0 %v169
    %225 = vmatpush.msra.mxu0 %v168
    %226 = vmatpush.msra.mxu0 %v167
    %227 = vmatpush.msra.mxu0 %v166
    %228 = vmatpush.msra.mxu0 %v165
    %229 = vmatpush.msra.mxu0 %v164
    %230 = vmatpush.msra.mxu0 %v163
    %231 = vmatpush.msra.mxu0 %v162
    %232 = vmatpush.msra.mxu0 %v161
    %233 = vmatpush.msra.mxu0 %v160
    %234 = vmatpush.msra.mxu0 %v159
    %235 = vmatpush.msra.mxu0 %v158
    %236 = vmatpush.msra.mxu0 %v157
    %237 = vmatpush.msra.mxu0 %v156
    %238 = vmatpush.msra.mxu0 %v155
    %239 = vmatmul.f32.gmra.mxu0 %v218
    %v240 = vpop.f32.mrf.mxu0
    %v241 = vadd.f32 0.0, %v240
    %242 = vdwg.mxu0
    %243 = vmatpush.msra.mxu0 0.0
    %244 = vmatpush.msra.mxu0 0.0
    %245 = vmatpush.msra.mxu0 0.0
    %246 = vmatpush.msra.mxu0 0.0
    %247 = vmatpush.msra.mxu0 0.0
    %248 = vmatpush.msra.mxu0 0.0
    %249 = vmatpush.msra.mxu0 0.0
    %250 = vmatpush.msra.mxu0 0.0
    %251 = vmatpush.msra.mxu0 0.0
    %252 = vmatpush.msra.mxu0 0.0
    %253 = vmatpush.msra.mxu0 0.0
    %254 = vmatpush.msra.mxu0 0.0
    %255 = vmatpush.msra.mxu0 0.0
    %256 = vmatpush.msra.mxu0 0.0
    %257 = vmatpush.msra.mxu0 %v172
    %258 = vmatpush.msra.mxu0 %v171
    %259 = vmatmul.f32.gmra.mxu0 %v221
    %v260 = vpop.f32.mrf.mxu0
    %v261 = vadd.f32 %v241, %v260
    %262 = vdwg.mxu0
    %v263 = vmul.f32 %v216, %v216
    %v264 = vsub.f32 %v261, %v263
    %v265 = vadd.f32 %v264, 1e-05
    %v266 = vrsqrt.pop %v265
    %v267 = vmul.f32 %v266, %v265
    %v268 = vmul.f32 %v267, %v266
    %v269 = vmul.f32 0.5, %v268
    %v270 = vsub.f32 1.5, %v269
    %v271 = vmul.f32 %v266, %v270
    %vm272 = vweird.f32 %v265
    %vm273 = vweird.f32 %v266
    %vm274 = vmor %vm272, %vm273
    %v275 = vsel %vm274, %v266, %v271
    %277 = vst [vmem:[#allocation1] ss:$2 sm:$0xff] %v173
    %v278 = vld.sshfl [vmem:[#allocation1] sm:$0xff pattern:$0x75316420]
    %v279 = vld.sshfl [vmem:[#allocation1 + $0x8] sm:$0xff pattern:$0x75316420]
    %vm280 = vcmask 23552
    %v282 = vsel %vm280, %v216, 0
    %vm284 = vcmask 1042432
    %v285 = vsel %vm284, %v278, 0
    %v287 = vsel %vm284, %v279, 0
    %289 = vmatpush.msra.mxu0 0.0
    %290 = vmatpush.msra.mxu0 0.0
    %291 = vmatpush.msra.mxu0 0.0
    %292 = vmatpush.msra.mxu0 0.0
    %293 = vmatpush.msra.mxu0 0.0
    %294 = vmatpush.msra.mxu0 0.0
    %295 = vmatpush.msra.mxu0 0.0
    %296 = vmatpush.msra.mxu0 0.0
    %297 = vmatpush.msra.mxu0 0.0
    %298 = vmatpush.msra.mxu0 0.0
    %299 = vmatpush.msra.mxu0 0.0
    %300 = vmatpush.msra.mxu0 0.0
    %301 = vmatpush.msra.mxu0 0.0
    %302 = vmatpush.msra.mxu0 0.0
    %303 = vmatpush.msra.mxu0 0.0
    %304 = vmatpush.msra.mxu0 %v285
    %305 = vmatmul.f32.gmra.mxu0 %v282
    %v306 = vpop.f32.mrf.mxu0
    %v307 = vadd.f32 0.0, %v306
    %308 = vdwg.mxu0
    %309 = vmatpush.msra.mxu0 0.0
    %310 = vmatpush.msra.mxu0 0.0
    %311 = vmatpush.msra.mxu0 0.0
    %312 = vmatpush.msra.mxu0 0.0
    %313 = vmatpush.msra.mxu0 0.0
    %314 = vmatpush.msra.mxu0 0.0
    %315 = vmatpush.msra.mxu0 0.0
    %316 = vmatpush.msra.mxu0 0.0
    %317 = vmatpush.msra.mxu0 0.0
    %318 = vmatpush.msra.mxu0 0.0
    %319 = vmatpush.msra.mxu0 0.0
    %320 = vmatpush.msra.mxu0 0.0
    %321 = vmatpush.msra.mxu0 0.0
    %322 = vmatpush.msra.mxu0 0.0
    %323 = vmatpush.msra.mxu0 0.0
    %324 = vmatpush.msra.mxu0 %v287
    %325 = vmatmul.f32.gmra.mxu0 %v282
    %v326 = vpop.f32.mrf.mxu0
    %v327 = vadd.f32 0.0, %v326
    %328 = vdwg.mxu0
    %329 = vst [vmem:[#allocation1] ss:$2 sm:$0xff] %v173
    %v330 = vld.sshfl [vmem:[#allocation1] sm:$0xff pattern:$0x75316420]
    %v331 = vld.sshfl [vmem:[#allocation1 + $0x8] sm:$0xff pattern:$0x75316420]
    %v333 = vsel %vm280, %v275, 0
    %v335 = vsel %vm284, %v330, 0
    %v337 = vsel %vm284, %v331, 0
    %339 = vmatpush.msra.mxu0 0.0
    %340 = vmatpush.msra.mxu0 0.0
    %341 = vmatpush.msra.mxu0 0.0
    %342 = vmatpush.msra.mxu0 0.0
    %343 = vmatpush.msra.mxu0 0.0
    %344 = vmatpush.msra.mxu0 0.0
    %345 = vmatpush.msra.mxu0 0.0
    %346 = vmatpush.msra.mxu0 0.0
    %347 = vmatpush.msra.mxu0 0.0
    %348 = vmatpush.msra.mxu0 0.0
    %349 = vmatpush.msra.mxu0 0.0
    %350 = vmatpush.msra.mxu0 0.0
    %351 = vmatpush.msra.mxu0 0.0
    %352 = vmatpush.msra.mxu0 0.0
    %353 = vmatpush.msra.mxu0 0.0
    %354 = vmatpush.msra.mxu0 %v335
    %355 = vmatmul.f32.gmra.mxu0 %v333
    %v356 = vpop.f32.mrf.mxu0
    %v357 = vadd.f32 0.0, %v356
    %358 = vdwg.mxu0
    %359 = vmatpush.msra.mxu0 0.0
    %360 = vmatpush.msra.mxu0 0.0
    %361 = vmatpush.msra.mxu0 0.0
    %362 = vmatpush.msra.mxu0 0.0
    %363 = vmatpush.msra.mxu0 0.0
    %364 = vmatpush.msra.mxu0 0.0
    %365 = vmatpush.msra.mxu0 0.0
    %366 = vmatpush.msra.mxu0 0.0
    %367 = vmatpush.msra.mxu0 0.0
    %368 = vmatpush.msra.mxu0 0.0
    %369 = vmatpush.msra.mxu0 0.0
    %370 = vmatpush.msra.mxu0 0.0
    %371 = vmatpush.msra.mxu0 0.0
    %372 = vmatpush.msra.mxu0 0.0
    %373 = vmatpush.msra.mxu0 0.0
    %374 = vmatpush.msra.mxu0 %v337
    %375 = vmatmul.f32.gmra.mxu0 %v333
    %v376 = vpop.f32.mrf.mxu0
    %v377 = vadd.f32 0.0, %v376
    %378 = vdwg.mxu0
    %v379 = vsub.f32 %v153, %v307
    %v380 = vsub.f32 %v154, %v327
    %v381 = vmul.f32 %v379, %v357
    %v382 = vmul.f32 %v380, %v377
    %v383 = vld [vmem:[#allocation2] sm:$0x3]
    %v385 = vperm.slane %v383, 0
    %v386 = vperm.slane %v383, 1
    %v389 = vmul.f32 %v381, %v385
    %v390 = vmul.f32 %v382, %v386
    %v391 = vld [vmem:[#allocation5] sm:$0x3]
    %v393 = vperm.slane %v391, 0
    %v394 = vperm.slane %v391, 1
    %v397 = vadd.f32 %v389, %v393
    %v398 = vadd.f32 %v390, %v394
    %v399 = vld [vmem:[%s5] sm:$0xf]
    %v400 = vld [vmem:[%s5 + $0x4] sm:$0xf]
    %v401 = vld [vmem:[%s5 + $0x8] sm:$0xf]
    %v402 = vld [vmem:[%s5 + $0xc] sm:$0xf]
    %v403 = vld [vmem:[%s5 + $0x10] sm:$0xf]
    %v404 = vld [vmem:[%s5 + $0x14] sm:$0xf]
    %v405 = vld [vmem:[%s5 + $0x18] sm:$0xf]
    %v406 = vld [vmem:[%s5 + $0x1c] sm:$0xf]
    %v407 = vld [vmem:[%s5 + $0x20] sm:$0xf]
    %v408 = vld [vmem:[%s5 + $0x24] sm:$0xf]
    %v409 = vld [vmem:[%s5 + $0x28] sm:$0xf]
    %v410 = vld [vmem:[%s5 + $0x2c] sm:$0xf]
    %v411 = vld [vmem:[%s5 + $0x30] sm:$0xf]
    %v412 = vld [vmem:[%s5 + $0x34] sm:$0xf]
    %v413 = vld [vmem:[%s5 + $0x38] sm:$0xf]
    %v414 = vld [vmem:[%s5 + $0x3c] sm:$0xf]
    %v415 = vld [vmem:[%s5 + $0x40] sm:$0xf]
    %v416 = vld [vmem:[%s5 + $0x44] sm:$0xf]
    %v417 = vpack.c.bf16 %v397, %v397
    %v418 = vpack.c.bf16 %v398, %v398
    %v419 = vld [vmem:[#allocation8] sm:$0x1]
    %v421 = vperm.slane %v419, 0
    %v441 = vunpack.c.l.b16 %v399
    %v442 = vunpack.c.l.b16 %v400
    %v443 = vunpack.c.l.b16 %v401
    %v444 = vunpack.c.l.b16 %v402
    %v445 = vunpack.c.l.b16 %v403
    %v446 = vunpack.c.l.b16 %v404
    %v447 = vunpack.c.l.b16 %v405
    %v448 = vunpack.c.l.b16 %v406
    %v449 = vunpack.c.l.b16 %v407
    %v450 = vunpack.c.l.b16 %v408
    %v451 = vunpack.c.l.b16 %v409
    %v452 = vunpack.c.l.b16 %v410
    %v453 = vunpack.c.l.b16 %v411
    %v454 = vunpack.c.l.b16 %v412
    %v455 = vunpack.c.l.b16 %v413
    %v456 = vunpack.c.l.b16 %v414
    %v457 = vunpack.c.l.b16 %v415
    %v458 = vunpack.c.l.b16 %v416
    %v459 = vpack.c.b16 %v442, %v441
    %v460 = vpack.c.b16 %v444, %v443
    %v461 = vpack.c.b16 %v446, %v445
    %v462 = vpack.c.b16 %v448, %v447
    %v463 = vpack.c.b16 %v450, %v449
    %v464 = vpack.c.b16 %v452, %v451
    %v465 = vpack.c.b16 %v454, %v453
    %v466 = vpack.c.b16 %v456, %v455
    %v467 = vpack.c.b16 %v458, %v457
    %v478 = vsel %vm174, %v418, 0
    %480 = vmatpush.bf16.msra.mxu0 %v466
    %481 = vmatpush.bf16.msra.mxu0 %v465
    %482 = vmatpush.bf16.msra.mxu0 %v464
    %483 = vmatpush.bf16.msra.mxu0 %v463
    %484 = vmatpush.bf16.msra.mxu0 %v462
    %485 = vmatpush.bf16.msra.mxu0 %v461
    %486 = vmatpush.bf16.msra.mxu0 %v460
    %487 = vmatpush.bf16.msra.mxu0 %v459
    %488 = vmatmul.bf16.gmra.mxu0 %v417
    %v489 = vpop.f32.mrf.mxu0
    %v490 = vadd.f32 %v421, %v489
    %v491 = vpop.f32.mrf.mxu0
    %492 = vdwg.mxu0
    %493 = vmatpush.bf16.msra.mxu0 0
    %494 = vmatpush.bf16.msra.mxu0 0
    %495 = vmatpush.bf16.msra.mxu0 0
    %496 = vmatpush.bf16.msra.mxu0 0
    %497 = vmatpush.bf16.msra.mxu0 0
    %498 = vmatpush.bf16.msra.mxu0 0
    %499 = vmatpush.bf16.msra.mxu0 0
    %500 = vmatpush.bf16.msra.mxu0 %v467
    %501 = vmatmul.bf16.gmra.mxu0 %v478
    %v502 = vpop.f32.mrf.mxu0
    %v503 = vadd.f32 %v490, %v502
    %v504 = vpop.f32.mrf.mxu0
    %505 = vdwg.mxu0
    %v506 = vxor.u32 %v503, 2147483648
    %v507 = vmul.f32 %v506, 1.442695
    %v508 = vpow.pop %v507
    %v509 = vadd.f32 %v508, 1.0
    %v510 = vrcp.pop %v509
    %v511 = vmul.f32 %v509, %v510
    %v512 = vsub.f32 1.0, %v511
    %v513 = vmul.f32 %v510, %v512
    %v514 = vadd.f32 %v510, %v513
    %vm515 = vweird.f32 %v509
    %vm516 = vweird.f32 %v510
    %vm517 = vmor %vm515, %vm516
    %v518 = vsel %vm517, %v510, %v514
    %v519 = vand.u32 2147483647, %v509
    %vm520 = vcmp.eq.f32.partialorder %v519, 8.507059e+37
    %v521 = vand.u32 %v509, 2147483648
    %v522 = vor.u32 1.1754944e-38, %v521
    %v523 = vsel %vm520, %v522, %v518
    %v524 = vmul.f32 1.0, %v523
    %v525 = vmul.f32 %v503, %v524
    %v526 = vld [vmem:[#allocation10] sm:$0xf]
    %v527 = vld [vmem:[#allocation10 + $0x4] sm:$0xf]
    %v528 = vld [vmem:[#allocation10 + $0x8] sm:$0xf]
    %v529 = vld [vmem:[#allocation10 + $0xc] sm:$0xf]
    %v530 = vld [vmem:[#allocation10 + $0x10] sm:$0xf]
    %v531 = vld [vmem:[#allocation10 + $0x14] sm:$0xf]
    %v532 = vld [vmem:[#allocation10 + $0x18] sm:$0xf]
    %v533 = vld [vmem:[#allocation10 + $0x1c] sm:$0xf]
    %v534 = vld [vmem:[#allocation10 + $0x20] sm:$0xf]
    %v535 = vld [vmem:[#allocation10 + $0x24] sm:$0xf]
    %v536 = vld [vmem:[#allocation10 + $0x28] sm:$0xf]
    %v537 = vld [vmem:[#allocation10 + $0x2c] sm:$0xf]
    %v538 = vpack.c.bf16 %v525, %v525
    %v539 = vld [vmem:[#allocation11] sm:$0x1]
    %v541 = vperm.slane %v539, 0
    %v555 = vunpack.c.l.b16 %v526
    %v556 = vunpack.c.l.b16 %v527
    %v557 = vunpack.c.l.b16 %v528
    %v558 = vunpack.c.l.b16 %v529
    %v559 = vunpack.c.l.b16 %v530
    %v560 = vunpack.c.l.b16 %v531
    %v561 = vunpack.c.l.b16 %v532
    %v562 = vunpack.c.l.b16 %v533
    %v563 = vunpack.c.l.b16 %v534
    %v564 = vunpack.c.l.b16 %v535
    %v565 = vunpack.c.l.b16 %v536
    %v566 = vunpack.c.l.b16 %v537
    %v567 = vpack.c.b16 %v556, %v555
    %v568 = vpack.c.b16 %v558, %v557
    %v569 = vpack.c.b16 %v560, %v559
    %v570 = vpack.c.b16 %v562, %v561
    %v571 = vpack.c.b16 %v564, %v563
    %v572 = vpack.c.b16 %v566, %v565
    %vm579 = vcmask 785408
    %v581 = vsel %vm579, %v538, 0
    %583 = vmatpush.bf16.msra.mxu0 0
    %584 = vmatpush.bf16.msra.mxu0 0
    %585 = vmatpush.bf16.msra.mxu0 %v572
    %586 = vmatpush.bf16.msra.mxu0 %v571
    %587 = vmatpush.bf16.msra.mxu0 %v570
    %588 = vmatpush.bf16.msra.mxu0 %v569
    %589 = vmatpush.bf16.msra.mxu0 %v568
    %590 = vmatpush.bf16.msra.mxu0 %v567
    %591 = vmatmul.bf16.gmra.mxu0 %v581
    %v592 = vpop.f32.mrf.mxu0
    %v593 = vadd.f32 %v541, %v592
    %v594 = vpop.f32.mrf.mxu0
    %595 = vdwg.mxu0
    %v596 = vld [vmem:[%s11] sm:$0xff]
    %v597 = vld [vmem:[%s11 + $0x8] sm:$0xf]
    %v598 = vld [vmem:[%s11 + $0xc] sm:$0xff]
    %v599 = vld [vmem:[%s11 + $0x14] sm:$0xf]
    %v600 = vld [vmem:[%s11 + $0x18] sm:$0xff]
    %v601 = vld [vmem:[%s11 + $0x20] sm:$0xf]
    %v602 = vld [vmem:[%s11 + $0x24] sm:$0xff]
    %v603 = vld [vmem:[%s11 + $0x2c] sm:$0xf]
    %v604 = vld [vmem:[%s11 + $0x30] sm:$0xff]
    %v605 = vld [vmem:[%s11 + $0x38] sm:$0xf]
    %v606 = vld [vmem:[%s11 + $0x3c] sm:$0xff]
    %v607 = vld [vmem:[%s11 + $0x44] sm:$0xf]
    %v608 = vld [vmem:[%s11 + $0x48] sm:$0xff]
    %v609 = vld [vmem:[%s11 + $0x50] sm:$0xf]
    %v610 = vld [vmem:[%s11 + $0x54] sm:$0xff]
    %v611 = vld [vmem:[%s11 + $0x5c] sm:$0xf]
    %v612 = vld [vmem:[%s11 + $0x60] sm:$0xff]
    %v613 = vld [vmem:[%s11 + $0x68] sm:$0xf]
    %v614 = vld [vmem:[%s11 + $0x6c] sm:$0xff]
    %v615 = vld [vmem:[%s11 + $0x74] sm:$0xf]
    %v616 = vld [vmem:[%s11 + $0x78] sm:$0xff]
    %v617 = vld [vmem:[%s11 + $0x80] sm:$0xf]
    %v618 = vld [vmem:[%s11 + $0x84] sm:$0xff]
    %v619 = vld [vmem:[%s11 + $0x8c] sm:$0xf]
    %v620 = vpack.c.bf16 %v593, %v593
    %v621 = vld [vmem:[%s12] sm:$0x7]
    %v623 = vperm.slane %v621, 0
    %v624 = vperm.slane %v621, 1
    %v625 = vperm.slane %v621, 2
    %v653 = vunpack.c.l.b16 %v596
    %v654 = vunpack.c.h.b16 %v596
    %v655 = vunpack.c.l.b16 %v597
    %v656 = vunpack.c.l.b16 %v598
    %v657 = vunpack.c.h.b16 %v598
    %v658 = vunpack.c.l.b16 %v599
    %v659 = vunpack.c.l.b16 %v600
    %v660 = vunpack.c.h.b16 %v600
    %v661 = vunpack.c.l.b16 %v601
    %v662 = vunpack.c.l.b16 %v602
    %v663 = vunpack.c.h.b16 %v602
    %v664 = vunpack.c.l.b16 %v603
    %v665 = vunpack.c.l.b16 %v604
    %v666 = vunpack.c.h.b16 %v604
    %v667 = vunpack.c.l.b16 %v605
    %v668 = vunpack.c.l.b16 %v606
    %v669 = vunpack.c.h.b16 %v606
    %v670 = vunpack.c.l.b16 %v607
    %v671 = vunpack.c.l.b16 %v608
    %v672 = vunpack.c.h.b16 %v608
    %v673 = vunpack.c.l.b16 %v609
    %v674 = vunpack.c.l.b16 %v610
    %v675 = vunpack.c.h.b16 %v610
    %v676 = vunpack.c.l.b16 %v611
    %v677 = vunpack.c.l.b16 %v612
    %v678 = vunpack.c.h.b16 %v612
    %v679 = vunpack.c.l.b16 %v613
    %v680 = vunpack.c.l.b16 %v614
    %v681 = vunpack.c.h.b16 %v614
    %v682 = vunpack.c.l.b16 %v615
    %v683 = vunpack.c.l.b16 %v616
    %v684 = vunpack.c.h.b16 %v616
    %v685 = vunpack.c.l.b16 %v617
    %v686 = vunpack.c.l.b16 %v618
    %v687 = vunpack.c.h.b16 %v618
    %v688 = vunpack.c.l.b16 %v619
    %v689 = vpack.c.b16 %v656, %v653
    %v690 = vpack.c.b16 %v657, %v654
    %v691 = vpack.c.b16 %v658, %v655
    %v692 = vpack.c.b16 %v662, %v659
    %v693 = vpack.c.b16 %v663, %v660
    %v694 = vpack.c.b16 %v664, %v661
    %v695 = vpack.c.b16 %v668, %v665
    %v696 = vpack.c.b16 %v669, %v666
    %v697 = vpack.c.b16 %v670, %v667
    %v698 = vpack.c.b16 %v674, %v671
    %v699 = vpack.c.b16 %v675, %v672
    %v700 = vpack.c.b16 %v676, %v673
    %v701 = vpack.c.b16 %v680, %v677
    %v702 = vpack.c.b16 %v681, %v678
    %v703 = vpack.c.b16 %v682, %v679
    %v704 = vpack.c.b16 %v686, %v683
    %v705 = vpack.c.b16 %v687, %v684
    %v706 = vpack.c.b16 %v688, %v685
    %v726 = vsel %vm579, %v620, 0
    %728 = vmatpush.bf16.msra.mxu0 0
    %729 = vmatpush.bf16.msra.mxu0 0
    %730 = vmatpush.bf16.msra.mxu0 %v704
    %731 = vmatpush.bf16.msra.mxu0 %v701
    %732 = vmatpush.bf16.msra.mxu0 %v698
    %733 = vmatpush.bf16.msra.mxu0 %v695
    %734 = vmatpush.bf16.msra.mxu0 %v692
    %735 = vmatpush.bf16.msra.mxu0 %v689
    %736 = vmatmul.bf16.gmra.mxu0 %v726
    %v737 = vpop.f32.mrf.mxu0
    %v738 = vadd.f32 %v623, %v737
    %v739 = vpop.f32.mrf.mxu0
    %740 = vdwg.mxu0
    %741 = vmatpush.bf16.msra.mxu0 0
    %742 = vmatpush.bf16.msra.mxu0 0
    %743 = vmatpush.bf16.msra.mxu0 %v705
    %744 = vmatpush.bf16.msra.mxu0 %v702
    %745 = vmatpush.bf16.msra.mxu0 %v699
    %746 = vmatpush.bf16.msra.mxu0 %v696
    %747 = vmatpush.bf16.msra.mxu0 %v693
    %748 = vmatpush.bf16.msra.mxu0 %v690
    %749 = vmatmul.bf16.gmra.mxu0 %v726
    %v750 = vpop.f32.mrf.mxu0
    %v751 = vadd.f32 %v624, %v750
    %v752 = vpop.f32.mrf.mxu0
    %753 = vdwg.mxu0
    %754 = vmatpush.bf16.msra.mxu0 0
    %755 = vmatpush.bf16.msra.mxu0 0
    %756 = vmatpush.bf16.msra.mxu0 %v706
    %757 = vmatpush.bf16.msra.mxu0 %v703
    %758 = vmatpush.bf16.msra.mxu0 %v700
    %759 = vmatpush.bf16.msra.mxu0 %v697
    %760 = vmatpush.bf16.msra.mxu0 %v694
    %761 = vmatpush.bf16.msra.mxu0 %v691
    %762 = vmatmul.bf16.gmra.mxu0 %v726
    %v763 = vpop.f32.mrf.mxu0
    %v764 = vadd.f32 %v625, %v763
    %v765 = vpop.f32.mrf.mxu0
    %766 = vdwg.mxu0
    %v767 = vld [vmem:[%s9] sm:$0xff]
    %v768 = vld [vmem:[%s9 + $0x8] sm:$0xff]
    %v769 = vld [vmem:[%s9 + $0x10] sm:$0xff]
    %v770 = vld [vmem:[%s9 + $0x18] sm:$0xff]
    %v771 = vld [vmem:[%s9 + $0x20] sm:$0xff]
    %v772 = vld [vmem:[%s9 + $0x28] sm:$0xff]
    %v773 = vld [vmem:[%s9 + $0x30] sm:$0xff]
    %v774 = vld [vmem:[%s9 + $0x38] sm:$0xff]
    %v775 = vld [vmem:[%s9 + $0x40] sm:$0xff]
    %v776 = vld [vmem:[%s9 + $0x48] sm:$0xff]
    %v777 = vld [vmem:[%s9 + $0x50] sm:$0xff]
    %v778 = vld [vmem:[%s9 + $0x58] sm:$0xff]
    %v779 = vld [vmem:[%s10] sm:$0x1]
    %v781 = vperm.slane %v779, 0
    %v784 = vsel %vm579, %v593, 0
    %786 = vmatpush.msra.mxu0 0.0
    %787 = vmatpush.msra.mxu0 0.0
    %788 = vmatpush.msra.mxu0 0.0
    %789 = vmatpush.msra.mxu0 0.0
    %790 = vmatpush.msra.mxu0 %v778
    %791 = vmatpush.msra.mxu0 %v777
    %792 = vmatpush.msra.mxu0 %v776
    %793 = vmatpush.msra.mxu0 %v775
    %794 = vmatpush.msra.mxu0 %v774
    %795 = vmatpush.msra.mxu0 %v773
    %796 = vmatpush.msra.mxu0 %v772
    %797 = vmatpush.msra.mxu0 %v771
    %798 = vmatpush.msra.mxu0 %v770
    %799 = vmatpush.msra.mxu0 %v769
    %800 = vmatpush.msra.mxu0 %v768
    %801 = vmatpush.msra.mxu0 %v767
    %802 = vmatmul.f32.gmra.mxu0 %v784
    %v803 = vpop.f32.mrf.mxu0
    %v804 = vadd.f32 %v781, %v803
    %805 = vdwg.mxu0
    %v806 = vsel %vm280, %v804, -inf
    %807 = vmax.xlane.f32.xlu0 %v806
    %v808 = vpop.xlane.xlu0 %807
    %v809 = vsub.f32 %v804, %v808
    %v810 = vmul.f32 %v809, 1.442695
    %v811 = vpow.pop %v810
    %v812 = vsel %vm280, %v811, 0.0
    %813 = vadd.xlane.f32.xlu0 %v812
    %v814 = vpop.xlane.xlu0 %813
    %v815 = vrcp.pop %v814
    %v816 = vmul.f32 %v814, %v815
    %v817 = vsub.f32 1.0, %v816
    %v818 = vmul.f32 %v815, %v817
    %v819 = vadd.f32 %v815, %v818
    %vm820 = vweird.f32 %v814
    %vm821 = vweird.f32 %v815
    %vm822 = vmor %vm820, %vm821
    %v823 = vsel %vm822, %v815, %v819
    %v824 = vand.u32 2147483647, %v814
    %vm825 = vcmp.eq.f32.partialorder %v824, 8.507059e+37
    %v826 = vand.u32 %v814, 2147483648
    %v827 = vor.u32 1.1754944e-38, %v826
    %v828 = vsel %vm825, %v827, %v823
    %v829 = vmul.f32 %v811, %v828
    %v830 = vld [vmem:[%s13] sm:$0x77]
    %v831 = vld [vmem:[%s13 + $0x8] sm:$0x7]
    %834 = vst [vmem:[#allocation1] ss:$2 sm:$0xff] %v830
    %s835 = scalar_lea.vmem [#allocation1], 16
    %836 = vst [vmem:[%s835] ss:$2 sm:$0xff] %v831
    %v837 = vld.sshfl [vmem:[#allocation1] sm:$0xff pattern:$0x75316420]
    %v838 = vld.sshfl [vmem:[#allocation1 + $0x8] sm:$0xff pattern:$0x75316420]
    %v839 = vld.sshfl [vmem:[#allocation1 + $0x10] sm:$0xff pattern:$0x75316420]
    %v841 = vsel %vm280, %v829, 0
    %v843 = vsel %vm284, %v837, 0
    %v845 = vsel %vm284, %v838, 0
    %v847 = vsel %vm284, %v839, 0
    %849 = vmatpush.msra.mxu0 0.0
    %850 = vmatpush.msra.mxu0 0.0
    %851 = vmatpush.msra.mxu0 0.0
    %852 = vmatpush.msra.mxu0 0.0
    %853 = vmatpush.msra.mxu0 0.0
    %854 = vmatpush.msra.mxu0 0.0
    %855 = vmatpush.msra.mxu0 0.0
    %856 = vmatpush.msra.mxu0 0.0
    %857 = vmatpush.msra.mxu0 0.0
    %858 = vmatpush.msra.mxu0 0.0
    %859 = vmatpush.msra.mxu0 0.0
    %860 = vmatpush.msra.mxu0 0.0
    %861 = vmatpush.msra.mxu0 0.0
    %862 = vmatpush.msra.mxu0 0.0
    %863 = vmatpush.msra.mxu0 0.0
    %864 = vmatpush.msra.mxu0 %v843
    %865 = vmatmul.f32.gmra.mxu0 %v841
    %v866 = vpop.f32.mrf.mxu0
    %v867 = vadd.f32 0.0, %v866
    %868 = vdwg.mxu0
    %869 = vmatpush.msra.mxu0 0.0
    %870 = vmatpush.msra.mxu0 0.0
    %871 = vmatpush.msra.mxu0 0.0
    %872 = vmatpush.msra.mxu0 0.0
    %873 = vmatpush.msra.mxu0 0.0
    %874 = vmatpush.msra.mxu0 0.0
    %875 = vmatpush.msra.mxu0 0.0
    %876 = vmatpush.msra.mxu0 0.0
    %877 = vmatpush.msra.mxu0 0.0
    %878 = vmatpush.msra.mxu0 0.0
    %879 = vmatpush.msra.mxu0 0.0
    %880 = vmatpush.msra.mxu0 0.0
    %881 = vmatpush.msra.mxu0 0.0
    %882 = vmatpush.msra.mxu0 0.0
    %883 = vmatpush.msra.mxu0 0.0
    %884 = vmatpush.msra.mxu0 %v845
    %885 = vmatmul.f32.gmra.mxu0 %v841
    %v886 = vpop.f32.mrf.mxu0
    %v887 = vadd.f32 0.0, %v886
    %888 = vdwg.mxu0
    %889 = vmatpush.msra.mxu0 0.0
    %890 = vmatpush.msra.mxu0 0.0
    %891 = vmatpush.msra.mxu0 0.0
    %892 = vmatpush.msra.mxu0 0.0
    %893 = vmatpush.msra.mxu0 0.0
    %894 = vmatpush.msra.mxu0 0.0
    %895 = vmatpush.msra.mxu0 0.0
    %896 = vmatpush.msra.mxu0 0.0
    %897 = vmatpush.msra.mxu0 0.0
    %898 = vmatpush.msra.mxu0 0.0
    %899 = vmatpush.msra.mxu0 0.0
    %900 = vmatpush.msra.mxu0 0.0
    %901 = vmatpush.msra.mxu0 0.0
    %902 = vmatpush.msra.mxu0 0.0
    %903 = vmatpush.msra.mxu0 0.0
    %904 = vmatpush.msra.mxu0 %v847
    %905 = vmatmul.f32.gmra.mxu0 %v841
    %v906 = vpop.f32.mrf.mxu0
    %v907 = vadd.f32 0.0, %v906
    %908 = vdwg.mxu0
    %v909 = vmul.f32 %v738, %v867
    %v910 = vmul.f32 %v751, %v887
    %v911 = vmul.f32 %v764, %v907
    %v912 = vld [vmem:[#allocation13] sm:$0xff]
    %v913 = vld [vmem:[#allocation13 + $0x8] sm:$0xff]
    %v914 = vld [vmem:[#allocation13 + $0x10] sm:$0xff]
    %v915 = vld [vmem:[#allocation13 + $0x18] sm:$0xff]
    %v916 = vld [vmem:[#allocation13 + $0x20] sm:$0xff]
    %v917 = vld [vmem:[#allocation13 + $0x28] sm:$0xff]
    %v918 = vld [vmem:[#allocation13 + $0x30] sm:$0xff]
    %v919 = vld [vmem:[#allocation13 + $0x38] sm:$0xff]
    %v920 = vld [vmem:[#allocation13 + $0x40] sm:$0xff]
    %v921 = vld [vmem:[#allocation13 + $0x48] sm:$0xff]
    %v922 = vld [vmem:[#allocation13 + $0x50] sm:$0xff]
    %v923 = vld [vmem:[#allocation13 + $0x58] sm:$0xff]
    %v924 = vld [vmem:[#allocation13 + $0x60] sm:$0xff]
    %v925 = vld [vmem:[#allocation13 + $0x68] sm:$0xff]
    %v926 = vld [vmem:[#allocation13 + $0x70] sm:$0xff]
    %v927 = vld [vmem:[#allocation13 + $0x78] sm:$0xff]
    %v928 = vld [vmem:[#allocation13 + $0x80] sm:$0xff]
    %v929 = vld [vmem:[#allocation13 + $0x88] sm:$0xff]
    %v930 = vld [vmem:[#allocation13 + $0x90] sm:$0xff]
    %v931 = vld [vmem:[#allocation13 + $0x98] sm:$0xff]
    %v932 = vld [vmem:[#allocation13 + $0xa0] sm:$0xff]
    %v933 = vld [vmem:[#allocation13 + $0xa8] sm:$0xff]
    %v934 = vld [vmem:[#allocation13 + $0xb0] sm:$0xff]
    %v935 = vld [vmem:[#allocation13 + $0xb8] sm:$0xff]
    %v936 = vld [vmem:[#allocation13 + $0xc0] sm:$0xff]
    %v937 = vld [vmem:[#allocation13 + $0xc8] sm:$0xff]
    %v938 = vld [vmem:[#allocation13 + $0xd0] sm:$0xff]
    %v939 = vld [vmem:[#allocation13 + $0xd8] sm:$0xff]
    %v940 = vld [vmem:[#allocation13 + $0xe0] sm:$0xff]
    %v941 = vld [vmem:[#allocation13 + $0xe8] sm:$0xff]
    %v942 = vld [vmem:[#allocation13 + $0xf0] sm:$0xff]
    %v943 = vld [vmem:[#allocation13 + $0xf8] sm:$0xff]
    %v944 = vld [vmem:[#allocation13 + $0x100] sm:$0xff]
    %v945 = vld [vmem:[#allocation13 + $0x108] sm:$0xff]
    %v946 = vld [vmem:[#allocation13 + $0x110] sm:$0xff]
    %v947 = vld [vmem:[#allocation13 + $0x118] sm:$0xff]
    %v948 = vld [vmem:[#allocation13 + $0x120] sm:$0xff]
    %v949 = vld [vmem:[#allocation13 + $0x128] sm:$0xff]
    %v950 = vld [vmem:[#allocation13 + $0x130] sm:$0xff]
    %v951 = vld [vmem:[#allocation13 + $0x138] sm:$0xff]
    %v952 = vld [vmem:[#allocation13 + $0x140] sm:$0xff]
    %v953 = vld [vmem:[#allocation13 + $0x148] sm:$0xff]
    %v954 = vld [vmem:[#allocation13 + $0x150] sm:$0xff]
    %v955 = vld [vmem:[#allocation13 + $0x158] sm:$0xff]
    %v956 = vld [vmem:[#allocation13 + $0x160] sm:$0xff]
    %v957 = vld [vmem:[#allocation13 + $0x168] sm:$0xff]
    %v958 = vld [vmem:[#allocation13 + $0x170] sm:$0xff]
    %v959 = vld [vmem:[#allocation13 + $0x178] sm:$0xff]
    %960 = vmatpush.msra.mxu0 %v927
    %961 = vmatpush.msra.mxu0 %v926
    %962 = vmatpush.msra.mxu0 %v925
    %963 = vmatpush.msra.mxu0 %v924
    %964 = vmatpush.msra.mxu0 %v923
    %965 = vmatpush.msra.mxu0 %v922
    %966 = vmatpush.msra.mxu0 %v921
    %967 = vmatpush.msra.mxu0 %v920
    %968 = vmatpush.msra.mxu0 %v919
    %969 = vmatpush.msra.mxu0 %v918
    %970 = vmatpush.msra.mxu0 %v917
    %971 = vmatpush.msra.mxu0 %v916
    %972 = vmatpush.msra.mxu0 %v915
    %973 = vmatpush.msra.mxu0 %v914
    %974 = vmatpush.msra.mxu0 %v913
    %975 = vmatpush.msra.mxu0 %v912
    %976 = vmatmul.f32.gmra.mxu0 %v909
    %v977 = vpop.f32.mrf.mxu0
    %v978 = vadd.f32 0.0, %v977
    %979 = vdwg.mxu0
    %980 = vmatpush.msra.mxu0 %v943
    %981 = vmatpush.msra.mxu0 %v942
    %982 = vmatpush.msra.mxu0 %v941
    %983 = vmatpush.msra.mxu0 %v940
    %984 = vmatpush.msra.mxu0 %v939
    %985 = vmatpush.msra.mxu0 %v938
    %986 = vmatpush.msra.mxu0 %v937
    %987 = vmatpush.msra.mxu0 %v936
    %988 = vmatpush.msra.mxu0 %v935
    %989 = vmatpush.msra.mxu0 %v934
    %990 = vmatpush.msra.mxu0 %v933
    %991 = vmatpush.msra.mxu0 %v932
    %992 = vmatpush.msra.mxu0 %v931
    %993 = vmatpush.msra.mxu0 %v930
    %994 = vmatpush.msra.mxu0 %v929
    %995 = vmatpush.msra.mxu0 %v928
    %996 = vmatmul.f32.gmra.mxu0 %v910
    %v997 = vpop.f32.mrf.mxu0
    %v998 = vadd.f32 %v978, %v997
    %999 = vdwg.mxu0
    %1000 = vmatpush.msra.mxu0 %v959
    %1001 = vmatpush.msra.mxu0 %v958
    %1002 = vmatpush.msra.mxu0 %v957
    %1003 = vmatpush.msra.mxu0 %v956
    %1004 = vmatpush.msra.mxu0 %v955
    %1005 = vmatpush.msra.mxu0 %v954
    %1006 = vmatpush.msra.mxu0 %v953
    %1007 = vmatpush.msra.mxu0 %v952
    %1008 = vmatpush.msra.mxu0 %v951
    %1009 = vmatpush.msra.mxu0 %v950
    %1010 = vmatpush.msra.mxu0 %v949
    %1011 = vmatpush.msra.mxu0 %v948
    %1012 = vmatpush.msra.mxu0 %v947
    %1013 = vmatpush.msra.mxu0 %v946
    %1014 = vmatpush.msra.mxu0 %v945
    %1015 = vmatpush.msra.mxu0 %v944
    %1016 = vmatmul.f32.gmra.mxu0 %v911
    %v1017 = vpop.f32.mrf.mxu0
    %v1018 = vadd.f32 %v998, %v1017
    %1019 = vdwg.mxu0
    %1020 = vst [vmem:[#allocation14] sm:$0xff] %v1018
    %1021 = vst.msk [vmem:[%s16] sm:$0xff] %vm280, %v829
    // Predicated region
    $region90: #{tpu_custom_call.1} parent=1 // pred_check
      _
    $region91: #{tpu_custom_call.1} parent=1 // pred_check_branch
      %1023 = sbr.rel (0) target = $region93
    $region92: #{tpu_custom_call.1} parent=1 // pred_region
      %1025 = vsyncadd [#allocation4], 0
      %s1027 = sshll.u32 [#allocation14], 4
      %s1028 = int_to_ptr.vmem [resolvable:$true] %s1027
      %s1029 = sshll.u32 %s15, 4
      %s1030 = int_to_ptr.hbm [resolvable:$true] %s1029
      %1032 = dma.vmem_to_hbm [thread:$0]  %s1028, 128, %s1030, [#allocation4]
    $region93: #{tpu_custom_call.1} parent=1 // pred_fallthru
      _
    // Predicated region
    $region94: #{tpu_custom_call.1} parent=1 // pred_check
      _
    $region95: #{tpu_custom_call.1} parent=1 // pred_check_branch
      %1034 = sbr.rel (0) target = $region97
    $region96: #{tpu_custom_call.1} parent=1 // pred_region
      _
    $region97: #{tpu_custom_call.1} parent=1 // pred_fallthru
      _
    // Predicated region
    $region98: #{tpu_custom_call.1} parent=1 // pred_check
      _
    $region99: #{tpu_custom_call.1} parent=1 // pred_check_branch
      %1036 = sbr.rel (0) target = $region101
    $region100: #{tpu_custom_call.1} parent=1 // pred_region
      %1038 = dma.done [#allocation4], 128
    $region101: #{tpu_custom_call.1} parent=1 // pred_fallthru
      _
    // Predicated region
    $region102: #{tpu_custom_call.1} parent=1 // pred_check
      _
    $region103: #{tpu_custom_call.1} parent=1 // pred_check_branch
      %1040 = sbr.rel (0) target = $region105
    $region104: #{tpu_custom_call.1} parent=1 // pred_region
      _
    $region105: #{tpu_custom_call.1} parent=1 // pred_fallthru
      _
    %1041 = vsyncpa [#allocation3], 1
    %1042 = vsyncpa [#allocation6], 1
    %1043 = vsyncpa [#allocation9], 1
    %1044 = vsyncpa [#allocation12], 1
    %1045 = vsyncpa [#allocation4], 1

// kernel: tpu_custom_call.1
$region0: #{tpu_custom_call.1}
  #allocation0 [shape = 'u32[]', space=smem, size = 0x4, offset = 0x4, fixed_abs, tag = 'smem constant byte address 0x4 - core index']
  #allocation1 [shape = 'u32[72,128]{1,0:T(1,128)}', space=vmem, size = 0x9000, scoped, tag = 'internal scratch']
  %s0 = inlined_call_operand.vmem [shape: f32[8,144], index: 0, kind: input, shape index: {}]
  %s1 = inlined_call_operand.hbm [shape: f32[1,144], index: 1, kind: input, shape index: {}]
  %s2 = inlined_call_operand.hbm [shape: f32[1,144], index: 2, kind: input, shape index: {}]
  %s3 = inlined_call_operand.vmem [shape: f32[144,3], index: 3, kind: input, shape index: {}]
  %s4 = inlined_call_operand.hbm [shape: f32[3,144], index: 4, kind: input, shape index: {}]
  %s5 = inlined_call_operand.vmem [shape: bf16[144,96], index: 5, kind: input, shape index: {}]
  %s6 = inlined_call_operand.hbm [shape: f32[1,96], index: 6, kind: input, shape index: {}]
  %s7 = inlined_call_operand.hbm [shape: bf16[96,96], index: 7, kind: input, shape index: {}]
  %s8 = inlined_call_operand.hbm [shape: f32[1,96], index: 8, kind: input, shape index: {}]
  %s9 = inlined_call_operand.vmem [shape: f32[96,3], index: 9, kind: input, shape index: {}]
  %s10 = inlined_call_operand.vmem [shape: f32[1,3], index: 10, kind: input, shape index: {}]
  %s11 = inlined_call_operand.vmem [shape: bf16[96,384], index: 11, kind: input, shape index: {}]
  %s12 = inlined_call_operand.vmem [shape: f32[1,384], index: 12, kind: input, shape index: {}]
  %s13 = inlined_call_operand.vmem [shape: f32[3,384], index: 13, kind: input, shape index: {}]
  %s14 = inlined_call_operand.hbm [shape: f32[384,128], index: 14, kind: input, shape index: {}]
  %s15 = inlined_call_operand.hbm [shape: f32[8,128], index: 15, kind: output, shape index: {0}]
  %s16 = inlined_call_operand.vmem [shape: f32[8,3], index: 16, kind: output, shape index: {1}]
  %17 = xla_tuple %s15, %s16
  %s18 = sld [smem:[#allocation0]]
  $region106: #{tpu_custom_call.1} parent=0
    _
  %s20 = ssub.s32 1, %s18
  %s21 = scalar_select 0, %s20, %s18
  $region1: #{tpu_custom_call.1} parent=0
    #allocation2 [shape = 'u8[1024]{0}', space=vmem, size = 0x400, scoped, tag = 'input window, operand 1, single buffered']
    #allocation3 [shape = 's32[1]{0}', space=sflag, size = 0x4, scoped, tag = 'scoped memory for tpu_custom_call.1']
    #allocation4 [shape = 's32[1]{0}', space=sflag, size = 0x4, scoped, tag = 'scoped memory for tpu_custom_call.1']
    #allocation5 [shape = 'u8[1024]{0}', space=vmem, size = 0x400, scoped, tag = 'input window, operand 2, single buffered']
    #allocation6 [shape = 's32[1]{0}', space=sflag, size = 0x4, scoped, tag = 'scoped memory for tpu_custom_call.1']
    #allocation7 [shape = 'u8[4096]{0}', space=vmem, size = 0x1000, scoped, tag = 'input window, operand 4, single buffered']
    #allocation8 [shape = 'u8[512]{0}', space=vmem, size = 0x400, scoped, tag = 'input window, operand 6, single buffered']
    #allocation9 [shape = 's32[1]{0}', space=sflag, size = 0x4, scoped, tag = 'scoped memory for tpu_custom_call.1']
    #allocation10 [shape = 'u8[24576]{0}', space=vmem, size = 0x6000, scoped, tag = 'input window, operand 7, single buffered']
    #allocation11 [shape = 'u8[512]{0}', space=vmem, size = 0x400, scoped, tag = 'input window, operand 8, single buffered']
    #allocation12 [shape = 's32[1]{0}', space=sflag, size = 0x4, scoped, tag = 'scoped memory for tpu_custom_call.1']
    #allocation13 [shape = 'u8[196608]{0}', space=vmem, size = 0x30000, scoped, tag = 'input window, operand 14, single buffered']
    #allocation14 [shape = 'u8[4096]{0}', space=vmem, size = 0x1000, scoped, tag = 'output window, operand 0, single buffered']
    %22 = vsyncpa [#allocation3], 0
    %23 = vsyncpa [#allocation6], 0
    %24 = vsyncpa [#allocation9], 0
    %25 = vsyncpa [#allocation12], 0
    %26 = vsyncpa [#allocation4], 0
    // Predicated region
    $region2: #{tpu_custom_call.1} parent=1 // pred_check
      _
    $region3: #{tpu_custom_call.1} parent=1 // pred_check_branch
      %28 = sbr.rel (0) target = $region5
    $region4: #{tpu_custom_call.1} parent=1 // pred_region
      _
    $region5: #{tpu_custom_call.1} parent=1 // pred_fallthru
      _
    // Predicated region
    $region6: #{tpu_custom_call.1} parent=1 // pred_check
      _
    $region7: #{tpu_custom_call.1} parent=1 // pred_check_branch
      %30 = sbr.rel (0) target = $region9
    $region8: #{tpu_custom_call.1} parent=1 // pred_region
      %32 = vsyncadd [#allocation3], 0
      %s34 = sshll.u32 %s1, 4
      %s35 = int_to_ptr.hbm [resolvable:$true] %s34
      %s36 = sshll.u32 [#allocation2], 4
      %s37 = int_to_ptr.vmem [resolvable:$true] %s36
      %39 = dma.hbm_to_vmem [thread:$0]  %s35, 32, %s37, [#allocation3]
    $region9: #{tpu_custom_call.1} parent=1 // pred_fallthru
      _
    // Predicated region
    $region10: #{tpu_custom_call.1} parent=1 // pred_check
      _
    $region11: #{tpu_custom_call.1} parent=1 // pred_check_branch
      %41 = sbr.rel (0) target = $region13
    $region12: #{tpu_custom_call.1} parent=1 // pred_region
      %43 = vsyncadd [#allocation6], 0
      %s45 = sshll.u32 %s2, 4
      %s46 = int_to_ptr.hbm [resolvable:$true] %s45
      %s47 = sshll.u32 [#allocation5], 4
      %s48 = int_to_ptr.vmem [resolvable:$true] %s47
      %50 = dma.hbm_to_vmem [thread:$0]  %s46, 32, %s48, [#allocation6]
    $region13: #{tpu_custom_call.1} parent=1 // pred_fallthru
      _
    // Predicated region
    $region14: #{tpu_custom_call.1} parent=1 // pred_check
      _
    $region15: #{tpu_custom_call.1} parent=1 // pred_check_branch
      %52 = sbr.rel (0) target = $region17
    $region16: #{tpu_custom_call.1} parent=1 // pred_region
      _
    $region17: #{tpu_custom_call.1} parent=1 // pred_fallthru
      _
    // Predicated region
    $region18: #{tpu_custom_call.1} parent=1 // pred_check
      _
    $region19: #{tpu_custom_call.1} parent=1 // pred_check_branch
      %54 = sbr.rel (0) target = $region21
    $region20: #{tpu_custom_call.1} parent=1 // pred_region
      %56 = vsyncadd [#allocation6], 0
      %s58 = sshll.u32 %s4, 4
      %s59 = int_to_ptr.hbm [resolvable:$true] %s58
      %s60 = sshll.u32 [#allocation7], 4
      %s61 = int_to_ptr.vmem [resolvable:$true] %s60
      %63 = dma.hbm_to_vmem [thread:$0]  %s59, 128, %s61, [#allocation6]
    $region21: #{tpu_custom_call.1} parent=1 // pred_fallthru
      _
    // Predicated region
    $region22: #{tpu_custom_call.1} parent=1 // pred_check
      _
    $region23: #{tpu_custom_call.1} parent=1 // pred_check_branch
      %65 = sbr.rel (0) target = $region25
    $region24: #{tpu_custom_call.1} parent=1 // pred_region
      _
    $region25: #{tpu_custom_call.1} parent=1 // pred_fallthru
      _
    // Predicated region
    $region26: #{tpu_custom_call.1} parent=1 // pred_check
      _
    $region27: #{tpu_custom_call.1} parent=1 // pred_check_branch
      %67 = sbr.rel (0) target = $region29
    $region28: #{tpu_custom_call.1} parent=1 // pred_region
      %69 = vsyncadd [#allocation9], 0
      %s71 = sshll.u32 %s6, 4
      %s72 = int_to_ptr.hbm [resolvable:$true] %s71
      %s73 = sshll.u32 [#allocation8], 4
      %s74 = int_to_ptr.vmem [resolvable:$true] %s73
      %76 = dma.hbm_to_vmem [thread:$0]  %s72, 16, %s74, [#allocation9]
    $region29: #{tpu_custom_call.1} parent=1 // pred_fallthru
      _
    // Predicated region
    $region30: #{tpu_custom_call.1} parent=1 // pred_check
      _
    $region31: #{tpu_custom_call.1} parent=1 // pred_check_branch
      %78 = sbr.rel (0) target = $region33
    $region32: #{tpu_custom_call.1} parent=1 // pred_region
      %80 = vsyncadd [#allocation9], 0
      %s81 = sshll.u32 %s7, 4
      %s82 = int_to_ptr.hbm [resolvable:$true] %s81
      %s83 = sshll.u32 [#allocation10], 4
      %s84 = int_to_ptr.vmem [resolvable:$true] %s83
      %89 = dma.hbm_to_vmem [thread:$0]  %s82, 768, %s84, [#allocation9], 64, 64, 4
    $region33: #{tpu_custom_call.1} parent=1 // pred_fallthru
      _
    // Predicated region
    $region34: #{tpu_custom_call.1} parent=1 // pred_check
      _
    $region35: #{tpu_custom_call.1} parent=1 // pred_check_branch
      %91 = sbr.rel (0) target = $region37
    $region36: #{tpu_custom_call.1} parent=1 // pred_region
      %93 = vsyncadd [#allocation12], 0
      %s95 = sshll.u32 %s8, 4
      %s96 = int_to_ptr.hbm [resolvable:$true] %s95
      %s97 = sshll.u32 [#allocation11], 4
      %s98 = int_to_ptr.vmem [resolvable:$true] %s97
      %100 = dma.hbm_to_vmem [thread:$0]  %s96, 16, %s98, [#allocation12]
    $region37: #{tpu_custom_call.1} parent=1 // pred_fallthru
      _
    // Predicated region
    $region38: #{tpu_custom_call.1} parent=1 // pred_check
      _
    $region39: #{tpu_custom_call.1} parent=1 // pred_check_branch
      %102 = sbr.rel (0) target = $region41
    $region40: #{tpu_custom_call.1} parent=1 // pred_region
      _
    $region41: #{tpu_custom_call.1} parent=1 // pred_fallthru
      _
    // Predicated region
    $region42: #{tpu_custom_call.1} parent=1 // pred_check
      _
    $region43: #{tpu_custom_call.1} parent=1 // pred_check_branch
      %104 = sbr.rel (0) target = $region45
    $region44: #{tpu_custom_call.1} parent=1 // pred_region
      _
    $region45: #{tpu_custom_call.1} parent=1 // pred_fallthru
      _
    // Predicated region
    $region46: #{tpu_custom_call.1} parent=1 // pred_check
      _
    $region47: #{tpu_custom_call.1} parent=1 // pred_check_branch
      %106 = sbr.rel (0) target = $region49
    $region48: #{tpu_custom_call.1} parent=1 // pred_region
      _
    $region49: #{tpu_custom_call.1} parent=1 // pred_fallthru
      _
    // Predicated region
    $region50: #{tpu_custom_call.1} parent=1 // pred_check
      _
    $region51: #{tpu_custom_call.1} parent=1 // pred_check_branch
      %108 = sbr.rel (0) target = $region53
    $region52: #{tpu_custom_call.1} parent=1 // pred_region
      _
    $region53: #{tpu_custom_call.1} parent=1 // pred_fallthru
      _
    // Predicated region
    $region54: #{tpu_custom_call.1} parent=1 // pred_check
      _
    $region55: #{tpu_custom_call.1} parent=1 // pred_check_branch
      %110 = sbr.rel (0) target = $region57
    $region56: #{tpu_custom_call.1} parent=1 // pred_region
      _
    $region57: #{tpu_custom_call.1} parent=1 // pred_fallthru
      _
    // Predicated region
    $region58: #{tpu_custom_call.1} parent=1 // pred_check
      _
    $region59: #{tpu_custom_call.1} parent=1 // pred_check_branch
      %112 = sbr.rel (0) target = $region61
    $region60: #{tpu_custom_call.1} parent=1 // pred_region
      %114 = vsyncadd [#allocation12], 0
      %s115 = sshll.u32 %s14, 4
      %s116 = int_to_ptr.hbm [resolvable:$true] %s115
      %s117 = sshll.u32 [#allocation13], 4
      %s118 = int_to_ptr.vmem [resolvable:$true] %s117
      %123 = dma.hbm_to_vmem [thread:$0]  %s116, 6144, %s118, [#allocation12], 128, 128, 8
    $region61: #{tpu_custom_call.1} parent=1 // pred_fallthru
      _
    // Predicated region
    $region62: #{tpu_custom_call.1} parent=1 // pred_check
      _
    $region63: #{tpu_custom_call.1} parent=1 // pred_check_branch
      %125 = sbr.rel (0) target = $region65
    $region64: #{tpu_custom_call.1} parent=1 // pred_region
      %127 = dma.done [#allocation3], 32
    $region65: #{tpu_custom_call.1} parent=1 // pred_fallthru
      _
    // Predicated region
    $region66: #{tpu_custom_call.1} parent=1 // pred_check
      _
    $region67: #{tpu_custom_call.1} parent=1 // pred_check_branch
      %129 = sbr.rel (0) target = $region69
    $region68: #{tpu_custom_call.1} parent=1 // pred_region
      %131 = dma.done [#allocation6], 32
    $region69: #{tpu_custom_call.1} parent=1 // pred_fallthru
      _
    // Predicated region
    $region70: #{tpu_custom_call.1} parent=1 // pred_check
      _
    $region71: #{tpu_custom_call.1} parent=1 // pred_check_branch
      %133 = sbr.rel (0) target = $region73
    $region72: #{tpu_custom_call.1} parent=1 // pred_region
      %135 = dma.done [#allocation6], 128
    $region73: #{tpu_custom_call.1} parent=1 // pred_fallthru
      _
    // Predicated region
    $region74: #{tpu_custom_call.1} parent=1 // pred_check
      _
    $region75: #{tpu_custom_call.1} parent=1 // pred_check_branch
      %137 = sbr.rel (0) target = $region77
    $region76: #{tpu_custom_call.1} parent=1 // pred_region
      %139 = dma.done [#allocation9], 16
    $region77: #{tpu_custom_call.1} parent=1 // pred_fallthru
      _
    // Predicated region
    $region78: #{tpu_custom_call.1} parent=1 // pred_check
      _
    $region79: #{tpu_custom_call.1} parent=1 // pred_check_branch
      %141 = sbr.rel (0) target = $region81
    $region80: #{tpu_custom_call.1} parent=1 // pred_region
      %143 = dma.done [#allocation9], 768
    $region81: #{tpu_custom_call.1} parent=1 // pred_fallthru
      _
    // Predicated region
    $region82: #{tpu_custom_call.1} parent=1 // pred_check
      _
    $region83: #{tpu_custom_call.1} parent=1 // pred_check_branch
      %145 = sbr.rel (0) target = $region85
    $region84: #{tpu_custom_call.1} parent=1 // pred_region
      %147 = dma.done [#allocation12], 16
    $region85: #{tpu_custom_call.1} parent=1 // pred_fallthru
      _
    // Predicated region
    $region86: #{tpu_custom_call.1} parent=1 // pred_check
      _
    $region87: #{tpu_custom_call.1} parent=1 // pred_check_branch
      %149 = sbr.rel (0) target = $region89
    $region88: #{tpu_custom_call.1} parent=1 // pred_region
      %151 = dma.done [#allocation12], 6144
    $region89: #{tpu_custom_call.1} parent=1 // pred_fallthru
      _
    %v153 = vld [vmem:[%s0] sm:$0xff]
    %v154 = vld [vmem:[%s0 + $0x8] sm:$0xff]
    %v155 = vld [vmem:[%s3] sm:$0xff]
    %v156 = vld [vmem:[%s3 + $0x8] sm:$0xff]
    %v157 = vld [vmem:[%s3 + $0x10] sm:$0xff]
    %v158 = vld [vmem:[%s3 + $0x18] sm:$0xff]
    %v159 = vld [vmem:[%s3 + $0x20] sm:$0xff]
    %v160 = vld [vmem:[%s3 + $0x28] sm:$0xff]
    %v161 = vld [vmem:[%s3 + $0x30] sm:$0xff]
    %v162 = vld [vmem:[%s3 + $0x38] sm:$0xff]
    %v163 = vld [vmem:[%s3 + $0x40] sm:$0xff]
    %v164 = vld [vmem:[%s3 + $0x48] sm:$0xff]
    %v165 = vld [vmem:[%s3 + $0x50] sm:$0xff]
    %v166 = vld [vmem:[%s3 + $0x58] sm:$0xff]
    %v167 = vld [vmem:[%s3 + $0x60] sm:$0xff]
    %v168 = vld [vmem:[%s3 + $0x68] sm:$0xff]
    %v169 = vld [vmem:[%s3 + $0x70] sm:$0xff]
    %v170 = vld [vmem:[%s3 + $0x78] sm:$0xff]
    %v171 = vld [vmem:[%s3 + $0x80] sm:$0xff]
    %v172 = vld [vmem:[%s3 + $0x88] sm:$0xff]
    %v173 = vld [vmem:[#allocation7] sm:$0x77]
    %vm174 = vcmask 130048
    %v176 = vsel %vm174, %v154, 0
    %178 = vmatpush.msra.mxu0 %v170
    %179 = vmatpush.msra.mxu0 %v169
    %180 = vmatpush.msra.mxu0 %v168
    %181 = vmatpush.msra.mxu0 %v167
    %182 = vmatpush.msra.mxu0 %v166
    %183 = vmatpush.msra.mxu0 %v165
    %184 = vmatpush.msra.mxu0 %v164
    %185 = vmatpush.msra.mxu0 %v163
    %186 = vmatpush.msra.mxu0 %v162
    %187 = vmatpush.msra.mxu0 %v161
    %188 = vmatpush.msra.mxu0 %v160
    %189 = vmatpush.msra.mxu0 %v159
    %190 = vmatpush.msra.mxu0 %v158
    %191 = vmatpush.msra.mxu0 %v157
    %192 = vmatpush.msra.mxu0 %v156
    %193 = vmatpush.msra.mxu0 %v155
    %194 = vmatmul.f32.gmra.mxu0 %v153
    %v195 = vpop.f32.mrf.mxu0
    %v196 = vadd.f32 0.0, %v195
    %197 = vdwg.mxu0
    %198 = vmatpush.msra.mxu0 0.0
    %199 = vmatpush.msra.mxu0 0.0
    %200 = vmatpush.msra.mxu0 0.0
    %201 = vmatpush.msra.mxu0 0.0
    %202 = vmatpush.msra.mxu0 0.0
    %203 = vmatpush.msra.mxu0 0.0
    %204 = vmatpush.msra.mxu0 0.0
    %205 = vmatpush.msra.mxu0 0.0
    %206 = vmatpush.msra.mxu0 0.0
    %207 = vmatpush.msra.mxu0 0.0
    %208 = vmatpush.msra.mxu0 0.0
    %209 = vmatpush.msra.mxu0 0.0
    %210 = vmatpush.msra.mxu0 0.0
    %211 = vmatpush.msra.mxu0 0.0
    %212 = vmatpush.msra.mxu0 %v172
    %213 = vmatpush.msra.mxu0 %v171
    %214 = vmatmul.f32.gmra.mxu0 %v176
    %v215 = vpop.f32.mrf.mxu0
    %v216 = vadd.f32 %v196, %v215
    %217 = vdwg.mxu0
    %v218 = vmul.f32 %v153, %v153
    %v219 = vmul.f32 %v154, %v154
    %v221 = vsel %vm174, %v219, 0
    %223 = vmatpush.msra.mxu0 %v170
    %224 = vmatpush.msra.mxu0 %v169
    %225 = vmatpush.msra.mxu0 %v168
    %226 = vmatpush.msra.mxu0 %v167
    %227 = vmatpush.msra.mxu0 %v166
    %228 = vmatpush.msra.mxu0 %v165
    %229 = vmatpush.msra.mxu0 %v164
    %230 = vmatpush.msra.mxu0 %v163
    %231 = vmatpush.msra.mxu0 %v162
    %232 = vmatpush.msra.mxu0 %v161
    %233 = vmatpush.msra.mxu0 %v160
    %234 = vmatpush.msra.mxu0 %v159
    %235 = vmatpush.msra.mxu0 %v158
    %236 = vmatpush.msra.mxu0 %v157
    %237 = vmatpush.msra.mxu0 %v156
    %238 = vmatpush.msra.mxu0 %v155
    %239 = vmatmul.f32.gmra.mxu0 %v218
    %v240 = vpop.f32.mrf.mxu0
    %v241 = vadd.f32 0.0, %v240
    %242 = vdwg.mxu0
    %243 = vmatpush.msra.mxu0 0.0
    %244 = vmatpush.msra.mxu0 0.0
    %245 = vmatpush.msra.mxu0 0.0
    %246 = vmatpush.msra.mxu0 0.0
    %247 = vmatpush.msra.mxu0 0.0
    %248 = vmatpush.msra.mxu0 0.0
    %249 = vmatpush.msra.mxu0 0.0
    %250 = vmatpush.msra.mxu0 0.0
    %251 = vmatpush.msra.mxu0 0.0
    %252 = vmatpush.msra.mxu0 0.0
    %253 = vmatpush.msra.mxu0 0.0
    %254 = vmatpush.msra.mxu0 0.0
    %255 = vmatpush.msra.mxu0 0.0
    %256 = vmatpush.msra.mxu0 0.0
    %257 = vmatpush.msra.mxu0 %v172
    %258 = vmatpush.msra.mxu0 %v171
    %259 = vmatmul.f32.gmra.mxu0 %v221
    %v260 = vpop.f32.mrf.mxu0
    %v261 = vadd.f32 %v241, %v260
    %262 = vdwg.mxu0
    %v263 = vmul.f32 %v216, %v216
    %v264 = vsub.f32 %v261, %v263
    %v265 = vadd.f32 %v264, 1e-05
    %v266 = vrsqrt.pop %v265
    %v267 = vmul.f32 %v266, %v265
    %v268 = vmul.f32 %v267, %v266
    %v269 = vmul.f32 0.5, %v268
    %v270 = vsub.f32 1.5, %v269
    %v271 = vmul.f32 %v266, %v270
    %vm272 = vweird.f32 %v265
    %vm273 = vweird.f32 %v266
    %vm274 = vmor %vm272, %vm273
    %v275 = vsel %vm274, %v266, %v271
    %277 = vst [vmem:[#allocation1] ss:$2 sm:$0xff] %v173
    %v278 = vld.sshfl [vmem:[#allocation1] sm:$0xff pattern:$0x75316420]
    %v279 = vld.sshfl [vmem:[#allocation1 + $0x8] sm:$0xff pattern:$0x75316420]
    %vm280 = vcmask 23552
    %v282 = vsel %vm280, %v216, 0
    %vm284 = vcmask 1042432
    %v285 = vsel %vm284, %v278, 0
    %v287 = vsel %vm284, %v279, 0
    %289 = vmatpush.msra.mxu0 0.0
    %290 = vmatpush.msra.mxu0 0.0
    %291 = vmatpush.msra.mxu0 0.0
    %292 = vmatpush.msra.mxu0 0.0
    %293 = vmatpush.msra.mxu0 0.0
    %294 = vmatpush.msra.mxu0 0.0
    %295 = vmatpush.msra.mxu0 0.0
    %296 = vmatpush.msra.mxu0 0.0
    %297 = vmatpush.msra.mxu0 0.0
    %298 = vmatpush.msra.mxu0 0.0
    %299 = vmatpush.msra.mxu0 0.0
    %300 = vmatpush.msra.mxu0 0.0
    %301 = vmatpush.msra.mxu0 0.0
    %302 = vmatpush.msra.mxu0 0.0
    %303 = vmatpush.msra.mxu0 0.0
    %304 = vmatpush.msra.mxu0 %v285
    %305 = vmatmul.f32.gmra.mxu0 %v282
    %v306 = vpop.f32.mrf.mxu0
    %v307 = vadd.f32 0.0, %v306
    %308 = vdwg.mxu0
    %309 = vmatpush.msra.mxu0 0.0
    %310 = vmatpush.msra.mxu0 0.0
    %311 = vmatpush.msra.mxu0 0.0
    %312 = vmatpush.msra.mxu0 0.0
    %313 = vmatpush.msra.mxu0 0.0
    %314 = vmatpush.msra.mxu0 0.0
    %315 = vmatpush.msra.mxu0 0.0
    %316 = vmatpush.msra.mxu0 0.0
    %317 = vmatpush.msra.mxu0 0.0
    %318 = vmatpush.msra.mxu0 0.0
    %319 = vmatpush.msra.mxu0 0.0
    %320 = vmatpush.msra.mxu0 0.0
    %321 = vmatpush.msra.mxu0 0.0
    %322 = vmatpush.msra.mxu0 0.0
    %323 = vmatpush.msra.mxu0 0.0
    %324 = vmatpush.msra.mxu0 %v287
    %325 = vmatmul.f32.gmra.mxu0 %v282
    %v326 = vpop.f32.mrf.mxu0
    %v327 = vadd.f32 0.0, %v326
    %328 = vdwg.mxu0
    %329 = vst [vmem:[#allocation1] ss:$2 sm:$0xff] %v173
    %v330 = vld.sshfl [vmem:[#allocation1] sm:$0xff pattern:$0x75316420]
    %v331 = vld.sshfl [vmem:[#allocation1 + $0x8] sm:$0xff pattern:$0x75316420]
    %v333 = vsel %vm280, %v275, 0
    %v335 = vsel %vm284, %v330, 0
    %v337 = vsel %vm284, %v331, 0
    %339 = vmatpush.msra.mxu0 0.0
    %340 = vmatpush.msra.mxu0 0.0
    %341 = vmatpush.msra.mxu0 0.0
    %342 = vmatpush.msra.mxu0 0.0
    %343 = vmatpush.msra.mxu0 0.0
    %344 = vmatpush.msra.mxu0 0.0
    %345 = vmatpush.msra.mxu0 0.0
    %346 = vmatpush.msra.mxu0 0.0
    %347 = vmatpush.msra.mxu0 0.0
    %348 = vmatpush.msra.mxu0 0.0
    %349 = vmatpush.msra.mxu0 0.0
    %350 = vmatpush.msra.mxu0 0.0
    %351 = vmatpush.msra.mxu0 0.0
    %352 = vmatpush.msra.mxu0 0.0
    %353 = vmatpush.msra.mxu0 0.0
    %354 = vmatpush.msra.mxu0 %v335
    %355 = vmatmul.f32.gmra.mxu0 %v333
    %v356 = vpop.f32.mrf.mxu0
    %v357 = vadd.f32 0.0, %v356
    %358 = vdwg.mxu0
    %359 = vmatpush.msra.mxu0 0.0
    %360 = vmatpush.msra.mxu0 0.0
    %361 = vmatpush.msra.mxu0 0.0
    %362 = vmatpush.msra.mxu0 0.0
    %363 = vmatpush.msra.mxu0 0.0
    %364 = vmatpush.msra.mxu0 0.0
    %365 = vmatpush.msra.mxu0 0.0
    %366 = vmatpush.msra.mxu0 0.0
    %367 = vmatpush.msra.mxu0 0.0
    %368 = vmatpush.msra.mxu0 0.0
    %369 = vmatpush.msra.mxu0 0.0
    %370 = vmatpush.msra.mxu0 0.0
    %371 = vmatpush.msra.mxu0 0.0
    %372 = vmatpush.msra.mxu0 0.0
    %373 = vmatpush.msra.mxu0 0.0
    %374 = vmatpush.msra.mxu0 %v337
    %375 = vmatmul.f32.gmra.mxu0 %v333
    %v376 = vpop.f32.mrf.mxu0
    %v377 = vadd.f32 0.0, %v376
    %378 = vdwg.mxu0
    %v379 = vsub.f32 %v153, %v307
    %v380 = vsub.f32 %v154, %v327
    %v381 = vmul.f32 %v379, %v357
    %v382 = vmul.f32 %v380, %v377
    %v383 = vld [vmem:[#allocation2] sm:$0x3]
    %v385 = vperm.slane %v383, 0
    %v386 = vperm.slane %v383, 1
    %v389 = vmul.f32 %v381, %v385
    %v390 = vmul.f32 %v382, %v386
    %v391 = vld [vmem:[#allocation5] sm:$0x3]
    %v393 = vperm.slane %v391, 0
    %v394 = vperm.slane %v391, 1
    %v397 = vadd.f32 %v389, %v393
    %v398 = vadd.f32 %v390, %v394
    %v399 = vld [vmem:[%s5] sm:$0xf]
    %v400 = vld [vmem:[%s5 + $0x4] sm:$0xf]
    %v401 = vld [vmem:[%s5 + $0x8] sm:$0xf]
    %v402 = vld [vmem:[%s5 + $0xc] sm:$0xf]
    %v403 = vld [vmem:[%s5 + $0x10] sm:$0xf]
    %v404 = vld [vmem:[%s5 + $0x14] sm:$0xf]
    %v405 = vld [vmem:[%s5 + $0x18] sm:$0xf]
    %v406 = vld [vmem:[%s5 + $0x1c] sm:$0xf]
    %v407 = vld [vmem:[%s5 + $0x20] sm:$0xf]
    %v408 = vld [vmem:[%s5 + $0x24] sm:$0xf]
    %v409 = vld [vmem:[%s5 + $0x28] sm:$0xf]
    %v410 = vld [vmem:[%s5 + $0x2c] sm:$0xf]
    %v411 = vld [vmem:[%s5 + $0x30] sm:$0xf]
    %v412 = vld [vmem:[%s5 + $0x34] sm:$0xf]
    %v413 = vld [vmem:[%s5 + $0x38] sm:$0xf]
    %v414 = vld [vmem:[%s5 + $0x3c] sm:$0xf]
    %v415 = vld [vmem:[%s5 + $0x40] sm:$0xf]
    %v416 = vld [vmem:[%s5 + $0x44] sm:$0xf]
    %v417 = vpack.c.bf16 %v397, %v397
    %v418 = vpack.c.bf16 %v398, %v398
    %v419 = vld [vmem:[#allocation8] sm:$0x1]
    %v421 = vperm.slane %v419, 0
    %v441 = vunpack.c.l.b16 %v399
    %v442 = vunpack.c.l.b16 %v400
    %v443 = vunpack.c.l.b16 %v401
    %v444 = vunpack.c.l.b16 %v402
    %v445 = vunpack.c.l.b16 %v403
    %v446 = vunpack.c.l.b16 %v404
    %v447 = vunpack.c.l.b16 %v405
    %v448 = vunpack.c.l.b16 %v406
    %v449 = vunpack.c.l.b16 %v407
    %v450 = vunpack.c.l.b16 %v408
    %v451 = vunpack.c.l.b16 %v409
    %v452 = vunpack.c.l.b16 %v410
    %v453 = vunpack.c.l.b16 %v411
    %v454 = vunpack.c.l.b16 %v412
    %v455 = vunpack.c.l.b16 %v413
    %v456 = vunpack.c.l.b16 %v414
    %v457 = vunpack.c.l.b16 %v415
    %v458 = vunpack.c.l.b16 %v416
    %v459 = vpack.c.b16 %v442, %v441
    %v460 = vpack.c.b16 %v444, %v443
    %v461 = vpack.c.b16 %v446, %v445
    %v462 = vpack.c.b16 %v448, %v447
    %v463 = vpack.c.b16 %v450, %v449
    %v464 = vpack.c.b16 %v452, %v451
    %v465 = vpack.c.b16 %v454, %v453
    %v466 = vpack.c.b16 %v456, %v455
    %v467 = vpack.c.b16 %v458, %v457
    %v478 = vsel %vm174, %v418, 0
    %480 = vmatpush.bf16.msra.mxu0 %v466
    %481 = vmatpush.bf16.msra.mxu0 %v465
    %482 = vmatpush.bf16.msra.mxu0 %v464
    %483 = vmatpush.bf16.msra.mxu0 %v463
    %484 = vmatpush.bf16.msra.mxu0 %v462
    %485 = vmatpush.bf16.msra.mxu0 %v461
    %486 = vmatpush.bf16.msra.mxu0 %v460
    %487 = vmatpush.bf16.msra.mxu0 %v459
    %488 = vmatmul.bf16.gmra.mxu0 %v417
    %v489 = vpop.f32.mrf.mxu0
    %v490 = vadd.f32 %v421, %v489
    %v491 = vpop.f32.mrf.mxu0
    %492 = vdwg.mxu0
    %493 = vmatpush.bf16.msra.mxu0 0
    %494 = vmatpush.bf16.msra.mxu0 0
    %495 = vmatpush.bf16.msra.mxu0 0
    %496 = vmatpush.bf16.msra.mxu0 0
    %497 = vmatpush.bf16.msra.mxu0 0
    %498 = vmatpush.bf16.msra.mxu0 0
    %499 = vmatpush.bf16.msra.mxu0 0
    %500 = vmatpush.bf16.msra.mxu0 %v467
    %501 = vmatmul.bf16.gmra.mxu0 %v478
    %v502 = vpop.f32.mrf.mxu0
    %v503 = vadd.f32 %v490, %v502
    %v504 = vpop.f32.mrf.mxu0
    %505 = vdwg.mxu0
    %v506 = vxor.u32 %v503, 2147483648
    %v507 = vmul.f32 %v506, 1.442695
    %v508 = vpow.pop %v507
    %v509 = vadd.f32 %v508, 1.0
    %v510 = vrcp.pop %v509
    %v511 = vmul.f32 %v509, %v510
    %v512 = vsub.f32 1.0, %v511
    %v513 = vmul.f32 %v510, %v512
    %v514 = vadd.f32 %v510, %v513
    %vm515 = vweird.f32 %v509
    %vm516 = vweird.f32 %v510
    %vm517 = vmor %vm515, %vm516
    %v518 = vsel %vm517, %v510, %v514
    %v519 = vand.u32 2147483647, %v509
    %vm520 = vcmp.eq.f32.partialorder %v519, 8.507059e+37
    %v521 = vand.u32 %v509, 2147483648
    %v522 = vor.u32 1.1754944e-38, %v521
    %v523 = vsel %vm520, %v522, %v518
    %v524 = vmul.f32 1.0, %v523
    %v525 = vmul.f32 %v503, %v524
    %v526 = vld [vmem:[#allocation10] sm:$0xf]
    %v527 = vld [vmem:[#allocation10 + $0x4] sm:$0xf]
    %v528 = vld [vmem:[#allocation10 + $0x8] sm:$0xf]
    %v529 = vld [vmem:[#allocation10 + $0xc] sm:$0xf]
    %v530 = vld [vmem:[#allocation10 + $0x10] sm:$0xf]
    %v531 = vld [vmem:[#allocation10 + $0x14] sm:$0xf]
    %v532 = vld [vmem:[#allocation10 + $0x18] sm:$0xf]
    %v533 = vld [vmem:[#allocation10 + $0x1c] sm:$0xf]
    %v534 = vld [vmem:[#allocation10 + $0x20] sm:$0xf]
    %v535 = vld [vmem:[#allocation10 + $0x24] sm:$0xf]
    %v536 = vld [vmem:[#allocation10 + $0x28] sm:$0xf]
    %v537 = vld [vmem:[#allocation10 + $0x2c] sm:$0xf]
    %v538 = vpack.c.bf16 %v525, %v525
    %v539 = vld [vmem:[#allocation11] sm:$0x1]
    %v541 = vperm.slane %v539, 0
    %v555 = vunpack.c.l.b16 %v526
    %v556 = vunpack.c.l.b16 %v527
    %v557 = vunpack.c.l.b16 %v528
    %v558 = vunpack.c.l.b16 %v529
    %v559 = vunpack.c.l.b16 %v530
    %v560 = vunpack.c.l.b16 %v531
    %v561 = vunpack.c.l.b16 %v532
    %v562 = vunpack.c.l.b16 %v533
    %v563 = vunpack.c.l.b16 %v534
    %v564 = vunpack.c.l.b16 %v535
    %v565 = vunpack.c.l.b16 %v536
    %v566 = vunpack.c.l.b16 %v537
    %v567 = vpack.c.b16 %v556, %v555
    %v568 = vpack.c.b16 %v558, %v557
    %v569 = vpack.c.b16 %v560, %v559
    %v570 = vpack.c.b16 %v562, %v561
    %v571 = vpack.c.b16 %v564, %v563
    %v572 = vpack.c.b16 %v566, %v565
    %vm579 = vcmask 785408
    %v581 = vsel %vm579, %v538, 0
    %583 = vmatpush.bf16.msra.mxu0 0
    %584 = vmatpush.bf16.msra.mxu0 0
    %585 = vmatpush.bf16.msra.mxu0 %v572
    %586 = vmatpush.bf16.msra.mxu0 %v571
    %587 = vmatpush.bf16.msra.mxu0 %v570
    %588 = vmatpush.bf16.msra.mxu0 %v569
    %589 = vmatpush.bf16.msra.mxu0 %v568
    %590 = vmatpush.bf16.msra.mxu0 %v567
    %591 = vmatmul.bf16.gmra.mxu0 %v581
    %v592 = vpop.f32.mrf.mxu0
    %v593 = vadd.f32 %v541, %v592
    %v594 = vpop.f32.mrf.mxu0
    %595 = vdwg.mxu0
    %v596 = vld [vmem:[%s11] sm:$0xff]
    %v597 = vld [vmem:[%s11 + $0x8] sm:$0xf]
    %v598 = vld [vmem:[%s11 + $0xc] sm:$0xff]
    %v599 = vld [vmem:[%s11 + $0x14] sm:$0xf]
    %v600 = vld [vmem:[%s11 + $0x18] sm:$0xff]
    %v601 = vld [vmem:[%s11 + $0x20] sm:$0xf]
    %v602 = vld [vmem:[%s11 + $0x24] sm:$0xff]
    %v603 = vld [vmem:[%s11 + $0x2c] sm:$0xf]
    %v604 = vld [vmem:[%s11 + $0x30] sm:$0xff]
    %v605 = vld [vmem:[%s11 + $0x38] sm:$0xf]
    %v606 = vld [vmem:[%s11 + $0x3c] sm:$0xff]
    %v607 = vld [vmem:[%s11 + $0x44] sm:$0xf]
    %v608 = vld [vmem:[%s11 + $0x48] sm:$0xff]
    %v609 = vld [vmem:[%s11 + $0x50] sm:$0xf]
    %v610 = vld [vmem:[%s11 + $0x54] sm:$0xff]
    %v611 = vld [vmem:[%s11 + $0x5c] sm:$0xf]
    %v612 = vld [vmem:[%s11 + $0x60] sm:$0xff]
    %v613 = vld [vmem:[%s11 + $0x68] sm:$0xf]
    %v614 = vld [vmem:[%s11 + $0x6c] sm:$0xff]
    %v615 = vld [vmem:[%s11 + $0x74] sm:$0xf]
    %v616 = vld [vmem:[%s11 + $0x78] sm:$0xff]
    %v617 = vld [vmem:[%s11 + $0x80] sm:$0xf]
    %v618 = vld [vmem:[%s11 + $0x84] sm:$0xff]
    %v619 = vld [vmem:[%s11 + $0x8c] sm:$0xf]
    %v620 = vpack.c.bf16 %v593, %v593
    %v621 = vld [vmem:[%s12] sm:$0x7]
    %v623 = vperm.slane %v621, 0
    %v624 = vperm.slane %v621, 1
    %v625 = vperm.slane %v621, 2
    %v653 = vunpack.c.l.b16 %v596
    %v654 = vunpack.c.h.b16 %v596
    %v655 = vunpack.c.l.b16 %v597
    %v656 = vunpack.c.l.b16 %v598
    %v657 = vunpack.c.h.b16 %v598
    %v658 = vunpack.c.l.b16 %v599
    %v659 = vunpack.c.l.b16 %v600
    %v660 = vunpack.c.h.b16 %v600
    %v661 = vunpack.c.l.b16 %v601
    %v662 = vunpack.c.l.b16 %v602
    %v663 = vunpack.c.h.b16 %v602
    %v664 = vunpack.c.l.b16 %v603
    %v665 = vunpack.c.l.b16 %v604
    %v666 = vunpack.c.h.b16 %v604
    %v667 = vunpack.c.l.b16 %v605
    %v668 = vunpack.c.l.b16 %v606
    %v669 = vunpack.c.h.b16 %v606
    %v670 = vunpack.c.l.b16 %v607
    %v671 = vunpack.c.l.b16 %v608
    %v672 = vunpack.c.h.b16 %v608
    %v673 = vunpack.c.l.b16 %v609
    %v674 = vunpack.c.l.b16 %v610
    %v675 = vunpack.c.h.b16 %v610
    %v676 = vunpack.c.l.b16 %v611
    %v677 = vunpack.c.l.b16 %v612
    %v678 = vunpack.c.h.b16 %v612
    %v679 = vunpack.c.l.b16 %v613
    %v680 = vunpack.c.l.b16 %v614
    %v681 = vunpack.c.h.b16 %v614
    %v682 = vunpack.c.l.b16 %v615
    %v683 = vunpack.c.l.b16 %v616
    %v684 = vunpack.c.h.b16 %v616
    %v685 = vunpack.c.l.b16 %v617
    %v686 = vunpack.c.l.b16 %v618
    %v687 = vunpack.c.h.b16 %v618
    %v688 = vunpack.c.l.b16 %v619
    %v689 = vpack.c.b16 %v656, %v653
    %v690 = vpack.c.b16 %v657, %v654
    %v691 = vpack.c.b16 %v658, %v655
    %v692 = vpack.c.b16 %v662, %v659
    %v693 = vpack.c.b16 %v663, %v660
    %v694 = vpack.c.b16 %v664, %v661
    %v695 = vpack.c.b16 %v668, %v665
    %v696 = vpack.c.b16 %v669, %v666
    %v697 = vpack.c.b16 %v670, %v667
    %v698 = vpack.c.b16 %v674, %v671
    %v699 = vpack.c.b16 %v675, %v672
    %v700 = vpack.c.b16 %v676, %v673
    %v701 = vpack.c.b16 %v680, %v677
    %v702 = vpack.c.b16 %v681, %v678
    %v703 = vpack.c.b16 %v682, %v679
    %v704 = vpack.c.b16 %v686, %v683
    %v705 = vpack.c.b16 %v687, %v684
    %v706 = vpack.c.b16 %v688, %v685
    %v726 = vsel %vm579, %v620, 0
    %728 = vmatpush.bf16.msra.mxu0 0
    %729 = vmatpush.bf16.msra.mxu0 0
    %730 = vmatpush.bf16.msra.mxu0 %v704
    %731 = vmatpush.bf16.msra.mxu0 %v701
    %732 = vmatpush.bf16.msra.mxu0 %v698
    %733 = vmatpush.bf16.msra.mxu0 %v695
    %734 = vmatpush.bf16.msra.mxu0 %v692
    %735 = vmatpush.bf16.msra.mxu0 %v689
    %736 = vmatmul.bf16.gmra.mxu0 %v726
    %v737 = vpop.f32.mrf.mxu0
    %v738 = vadd.f32 %v623, %v737
    %v739 = vpop.f32.mrf.mxu0
    %740 = vdwg.mxu0
    %741 = vmatpush.bf16.msra.mxu0 0
    %742 = vmatpush.bf16.msra.mxu0 0
    %743 = vmatpush.bf16.msra.mxu0 %v705
    %744 = vmatpush.bf16.msra.mxu0 %v702
    %745 = vmatpush.bf16.msra.mxu0 %v699
    %746 = vmatpush.bf16.msra.mxu0 %v696
    %747 = vmatpush.bf16.msra.mxu0 %v693
    %748 = vmatpush.bf16.msra.mxu0 %v690
    %749 = vmatmul.bf16.gmra.mxu0 %v726
    %v750 = vpop.f32.mrf.mxu0
    %v751 = vadd.f32 %v624, %v750
    %v752 = vpop.f32.mrf.mxu0
    %753 = vdwg.mxu0
    %754 = vmatpush.bf16.msra.mxu0 0
    %755 = vmatpush.bf16.msra.mxu0 0
    %756 = vmatpush.bf16.msra.mxu0 %v706
    %757 = vmatpush.bf16.msra.mxu0 %v703
    %758 = vmatpush.bf16.msra.mxu0 %v700
    %759 = vmatpush.bf16.msra.mxu0 %v697
    %760 = vmatpush.bf16.msra.mxu0 %v694
    %761 = vmatpush.bf16.msra.mxu0 %v691
    %762 = vmatmul.bf16.gmra.mxu0 %v726
    %v763 = vpop.f32.mrf.mxu0
    %v764 = vadd.f32 %v625, %v763
    %v765 = vpop.f32.mrf.mxu0
    %766 = vdwg.mxu0
    %v767 = vld [vmem:[%s9] sm:$0xff]
    %v768 = vld [vmem:[%s9 + $0x8] sm:$0xff]
    %v769 = vld [vmem:[%s9 + $0x10] sm:$0xff]
    %v770 = vld [vmem:[%s9 + $0x18] sm:$0xff]
    %v771 = vld [vmem:[%s9 + $0x20] sm:$0xff]
    %v772 = vld [vmem:[%s9 + $0x28] sm:$0xff]
    %v773 = vld [vmem:[%s9 + $0x30] sm:$0xff]
    %v774 = vld [vmem:[%s9 + $0x38] sm:$0xff]
    %v775 = vld [vmem:[%s9 + $0x40] sm:$0xff]
    %v776 = vld [vmem:[%s9 + $0x48] sm:$0xff]
    %v777 = vld [vmem:[%s9 + $0x50] sm:$0xff]
    %v778 = vld [vmem:[%s9 + $0x58] sm:$0xff]
    %v779 = vld [vmem:[%s10] sm:$0x1]
    %v781 = vperm.slane %v779, 0
    %v784 = vsel %vm579, %v593, 0
    %786 = vmatpush.msra.mxu0 0.0
    %787 = vmatpush.msra.mxu0 0.0
    %788 = vmatpush.msra.mxu0 0.0
    %789 = vmatpush.msra.mxu0 0.0
    %790 = vmatpush.msra.mxu0 %v778
    %791 = vmatpush.msra.mxu0 %v777
    %792 = vmatpush.msra.mxu0 %v776
    %793 = vmatpush.msra.mxu0 %v775
    %794 = vmatpush.msra.mxu0 %v774
    %795 = vmatpush.msra.mxu0 %v773
    %796 = vmatpush.msra.mxu0 %v772
    %797 = vmatpush.msra.mxu0 %v771
    %798 = vmatpush.msra.mxu0 %v770
    %799 = vmatpush.msra.mxu0 %v769
    %800 = vmatpush.msra.mxu0 %v768
    %801 = vmatpush.msra.mxu0 %v767
    %802 = vmatmul.f32.gmra.mxu0 %v784
    %v803 = vpop.f32.mrf.mxu0
    %v804 = vadd.f32 %v781, %v803
    %805 = vdwg.mxu0
    %v806 = vsel %vm280, %v804, -inf
    %807 = vmax.xlane.f32.xlu0 %v806
    %v808 = vpop.xlane.xlu0 %807
    %v809 = vsub.f32 %v804, %v808
    %v810 = vmul.f32 %v809, 1.442695
    %v811 = vpow.pop %v810
    %v812 = vsel %vm280, %v811, 0.0
    %813 = vadd.xlane.f32.xlu0 %v812
    %v814 = vpop.xlane.xlu0 %813
    %v815 = vrcp.pop %v814
    %v816 = vmul.f32 %v814, %v815
    %v817 = vsub.f32 1.0, %v816
    %v818 = vmul.f32 %v815, %v817
    %v819 = vadd.f32 %v815, %v818
    %vm820 = vweird.f32 %v814
    %vm821 = vweird.f32 %v815
    %vm822 = vmor %vm820, %vm821
    %v823 = vsel %vm822, %v815, %v819
    %v824 = vand.u32 2147483647, %v814
    %vm825 = vcmp.eq.f32.partialorder %v824, 8.507059e+37
    %v826 = vand.u32 %v814, 2147483648
    %v827 = vor.u32 1.1754944e-38, %v826
    %v828 = vsel %vm825, %v827, %v823
    %v829 = vmul.f32 %v811, %v828
    %v830 = vld [vmem:[%s13] sm:$0x77]
    %v831 = vld [vmem:[%s13 + $0x8] sm:$0x7]
    %834 = vst [vmem:[#allocation1] ss:$2 sm:$0xff] %v830
    %s835 = scalar_lea.vmem [#allocation1], 16
    %836 = vst [vmem:[%s835] ss:$2 sm:$0xff] %v831
    %v837 = vld.sshfl [vmem:[#allocation1] sm:$0xff pattern:$0x75316420]
    %v838 = vld.sshfl [vmem:[#allocation1 + $0x8] sm:$0xff pattern:$0x75316420]
    %v839 = vld.sshfl [vmem:[#allocation1 + $0x10] sm:$0xff pattern:$0x75316420]
    %v841 = vsel %vm280, %v829, 0
    %v843 = vsel %vm284, %v837, 0
    %v845 = vsel %vm284, %v838, 0
    %v847 = vsel %vm284, %v839, 0
    %849 = vmatpush.msra.mxu0 0.0
    %850 = vmatpush.msra.mxu0 0.0
    %851 = vmatpush.msra.mxu0 0.0
    %852 = vmatpush.msra.mxu0 0.0
    %853 = vmatpush.msra.mxu0 0.0
    %854 = vmatpush.msra.mxu0 0.0
    %855 = vmatpush.msra.mxu0 0.0
    %856 = vmatpush.msra.mxu0 0.0
    %857 = vmatpush.msra.mxu0 0.0
    %858 = vmatpush.msra.mxu0 0.0
    %859 = vmatpush.msra.mxu0 0.0
    %860 = vmatpush.msra.mxu0 0.0
    %861 = vmatpush.msra.mxu0 0.0
    %862 = vmatpush.msra.mxu0 0.0
    %863 = vmatpush.msra.mxu0 0.0
    %864 = vmatpush.msra.mxu0 %v843
    %865 = vmatmul.f32.gmra.mxu0 %v841
    %v866 = vpop.f32.mrf.mxu0
    %v867 = vadd.f32 0.0, %v866
    %868 = vdwg.mxu0
    %869 = vmatpush.msra.mxu0 0.0
    %870 = vmatpush.msra.mxu0 0.0
    %871 = vmatpush.msra.mxu0 0.0
    %872 = vmatpush.msra.mxu0 0.0
    %873 = vmatpush.msra.mxu0 0.0
    %874 = vmatpush.msra.mxu0 0.0
    %875 = vmatpush.msra.mxu0 0.0
    %876 = vmatpush.msra.mxu0 0.0
    %877 = vmatpush.msra.mxu0 0.0
    %878 = vmatpush.msra.mxu0 0.0
    %879 = vmatpush.msra.mxu0 0.0
    %880 = vmatpush.msra.mxu0 0.0
    %881 = vmatpush.msra.mxu0 0.0
    %882 = vmatpush.msra.mxu0 0.0
    %883 = vmatpush.msra.mxu0 0.0
    %884 = vmatpush.msra.mxu0 %v845
    %885 = vmatmul.f32.gmra.mxu0 %v841
    %v886 = vpop.f32.mrf.mxu0
    %v887 = vadd.f32 0.0, %v886
    %888 = vdwg.mxu0
    %889 = vmatpush.msra.mxu0 0.0
    %890 = vmatpush.msra.mxu0 0.0
    %891 = vmatpush.msra.mxu0 0.0
    %892 = vmatpush.msra.mxu0 0.0
    %893 = vmatpush.msra.mxu0 0.0
    %894 = vmatpush.msra.mxu0 0.0
    %895 = vmatpush.msra.mxu0 0.0
    %896 = vmatpush.msra.mxu0 0.0
    %897 = vmatpush.msra.mxu0 0.0
    %898 = vmatpush.msra.mxu0 0.0
    %899 = vmatpush.msra.mxu0 0.0
    %900 = vmatpush.msra.mxu0 0.0
    %901 = vmatpush.msra.mxu0 0.0
    %902 = vmatpush.msra.mxu0 0.0
    %903 = vmatpush.msra.mxu0 0.0
    %904 = vmatpush.msra.mxu0 %v847
    %905 = vmatmul.f32.gmra.mxu0 %v841
    %v906 = vpop.f32.mrf.mxu0
    %v907 = vadd.f32 0.0, %v906
    %908 = vdwg.mxu0
    %v909 = vmul.f32 %v738, %v867
    %v910 = vmul.f32 %v751, %v887
    %v911 = vmul.f32 %v764, %v907
    %v912 = vld [vmem:[#allocation13] sm:$0xff]
    %v913 = vld [vmem:[#allocation13 + $0x8] sm:$0xff]
    %v914 = vld [vmem:[#allocation13 + $0x10] sm:$0xff]
    %v915 = vld [vmem:[#allocation13 + $0x18] sm:$0xff]
    %v916 = vld [vmem:[#allocation13 + $0x20] sm:$0xff]
    %v917 = vld [vmem:[#allocation13 + $0x28] sm:$0xff]
    %v918 = vld [vmem:[#allocation13 + $0x30] sm:$0xff]
    %v919 = vld [vmem:[#allocation13 + $0x38] sm:$0xff]
    %v920 = vld [vmem:[#allocation13 + $0x40] sm:$0xff]
    %v921 = vld [vmem:[#allocation13 + $0x48] sm:$0xff]
    %v922 = vld [vmem:[#allocation13 + $0x50] sm:$0xff]
    %v923 = vld [vmem:[#allocation13 + $0x58] sm:$0xff]
    %v924 = vld [vmem:[#allocation13 + $0x60] sm:$0xff]
    %v925 = vld [vmem:[#allocation13 + $0x68] sm:$0xff]
    %v926 = vld [vmem:[#allocation13 + $0x70] sm:$0xff]
    %v927 = vld [vmem:[#allocation13 + $0x78] sm:$0xff]
    %v928 = vld [vmem:[#allocation13 + $0x80] sm:$0xff]
    %v929 = vld [vmem:[#allocation13 + $0x88] sm:$0xff]
    %v930 = vld [vmem:[#allocation13 + $0x90] sm:$0xff]
    %v931 = vld [vmem:[#allocation13 + $0x98] sm:$0xff]
    %v932 = vld [vmem:[#allocation13 + $0xa0] sm:$0xff]
    %v933 = vld [vmem:[#allocation13 + $0xa8] sm:$0xff]
    %v934 = vld [vmem:[#allocation13 + $0xb0] sm:$0xff]
    %v935 = vld [vmem:[#allocation13 + $0xb8] sm:$0xff]
    %v936 = vld [vmem:[#allocation13 + $0xc0] sm:$0xff]
    %v937 = vld [vmem:[#allocation13 + $0xc8] sm:$0xff]
    %v938 = vld [vmem:[#allocation13 + $0xd0] sm:$0xff]
    %v939 = vld [vmem:[#allocation13 + $0xd8] sm:$0xff]
    %v940 = vld [vmem:[#allocation13 + $0xe0] sm:$0xff]
    %v941 = vld [vmem:[#allocation13 + $0xe8] sm:$0xff]
    %v942 = vld [vmem:[#allocation13 + $0xf0] sm:$0xff]
    %v943 = vld [vmem:[#allocation13 + $0xf8] sm:$0xff]
    %v944 = vld [vmem:[#allocation13 + $0x100] sm:$0xff]
    %v945 = vld [vmem:[#allocation13 + $0x108] sm:$0xff]
    %v946 = vld [vmem:[#allocation13 + $0x110] sm:$0xff]
    %v947 = vld [vmem:[#allocation13 + $0x118] sm:$0xff]
    %v948 = vld [vmem:[#allocation13 + $0x120] sm:$0xff]
    %v949 = vld [vmem:[#allocation13 + $0x128] sm:$0xff]
    %v950 = vld [vmem:[#allocation13 + $0x130] sm:$0xff]
    %v951 = vld [vmem:[#allocation13 + $0x138] sm:$0xff]
    %v952 = vld [vmem:[#allocation13 + $0x140] sm:$0xff]
    %v953 = vld [vmem:[#allocation13 + $0x148] sm:$0xff]
    %v954 = vld [vmem:[#allocation13 + $0x150] sm:$0xff]
    %v955 = vld [vmem:[#allocation13 + $0x158] sm:$0xff]
    %v956 = vld [vmem:[#allocation13 + $0x160] sm:$0xff]
    %v957 = vld [vmem:[#allocation13 + $0x168] sm:$0xff]
    %v958 = vld [vmem:[#allocation13 + $0x170] sm:$0xff]
    %v959 = vld [vmem:[#allocation13 + $0x178] sm:$0xff]
    %960 = vmatpush.msra.mxu0 %v927
    %961 = vmatpush.msra.mxu0 %v926
    %962 = vmatpush.msra.mxu0 %v925
    %963 = vmatpush.msra.mxu0 %v924
    %964 = vmatpush.msra.mxu0 %v923
    %965 = vmatpush.msra.mxu0 %v922
    %966 = vmatpush.msra.mxu0 %v921
    %967 = vmatpush.msra.mxu0 %v920
    %968 = vmatpush.msra.mxu0 %v919
    %969 = vmatpush.msra.mxu0 %v918
    %970 = vmatpush.msra.mxu0 %v917
    %971 = vmatpush.msra.mxu0 %v916
    %972 = vmatpush.msra.mxu0 %v915
    %973 = vmatpush.msra.mxu0 %v914
    %974 = vmatpush.msra.mxu0 %v913
    %975 = vmatpush.msra.mxu0 %v912
    %976 = vmatmul.f32.gmra.mxu0 %v909
    %v977 = vpop.f32.mrf.mxu0
    %v978 = vadd.f32 0.0, %v977
    %979 = vdwg.mxu0
    %980 = vmatpush.msra.mxu0 %v943
    %981 = vmatpush.msra.mxu0 %v942
    %982 = vmatpush.msra.mxu0 %v941
    %983 = vmatpush.msra.mxu0 %v940
    %984 = vmatpush.msra.mxu0 %v939
    %985 = vmatpush.msra.mxu0 %v938
    %986 = vmatpush.msra.mxu0 %v937
    %987 = vmatpush.msra.mxu0 %v936
    %988 = vmatpush.msra.mxu0 %v935
    %989 = vmatpush.msra.mxu0 %v934
    %990 = vmatpush.msra.mxu0 %v933
    %991 = vmatpush.msra.mxu0 %v932
    %992 = vmatpush.msra.mxu0 %v931
    %993 = vmatpush.msra.mxu0 %v930
    %994 = vmatpush.msra.mxu0 %v929
    %995 = vmatpush.msra.mxu0 %v928
    %996 = vmatmul.f32.gmra.mxu0 %v910
    %v997 = vpop.f32.mrf.mxu0
    %v998 = vadd.f32 %v978, %v997
    %999 = vdwg.mxu0
    %1000 = vmatpush.msra.mxu0 %v959
    %1001 = vmatpush.msra.mxu0 %v958
    %1002 = vmatpush.msra.mxu0 %v957
    %1003 = vmatpush.msra.mxu0 %v956
    %1004 = vmatpush.msra.mxu0 %v955
    %1005 = vmatpush.msra.mxu0 %v954
    %1006 = vmatpush.msra.mxu0 %v953
    %1007 = vmatpush.msra.mxu0 %v952
    %1008 = vmatpush.msra.mxu0 %v951
    %1009 = vmatpush.msra.mxu0 %v950
    %1010 = vmatpush.msra.mxu0 %v949
    %1011 = vmatpush.msra.mxu0 %v948
    %1012 = vmatpush.msra.mxu0 %v947
    %1013 = vmatpush.msra.mxu0 %v946
    %1014 = vmatpush.msra.mxu0 %v945
    %1015 = vmatpush.msra.mxu0 %v944
    %1016 = vmatmul.f32.gmra.mxu0 %v911
    %v1017 = vpop.f32.mrf.mxu0
    %v1018 = vadd.f32 %v998, %v1017
    %1019 = vdwg.mxu0
    %1020 = vst [vmem:[#allocation14] sm:$0xff] %v1018
    %1021 = vst.msk [vmem:[%s16] sm:$0xff] %vm280, %v829
    // Predicated region
    $region90: #{tpu_custom_call.1} parent=1 // pred_check
      _
    $region91: #{tpu_custom_call.1} parent=1 // pred_check_branch
      %1023 = sbr.rel (0) target = $region93
    $region92: #{tpu_custom_call.1} parent=1 // pred_region
      %1025 = vsyncadd [#allocation4], 0
      %s1027 = sshll.u32 [#allocation14], 4
      %s1028 = int_to_ptr.vmem [resolvable:$true] %s1027
      %s1029 = sshll.u32 %s15, 4
      %s1030 = int_to_ptr.hbm [resolvable:$true] %s1029
      %1032 = dma.vmem_to_hbm [thread:$0]  %s1028, 128, %s1030, [#allocation4]
    $region93: #{tpu_custom_call.1} parent=1 // pred_fallthru
      _
    // Predicated region
    $region94: #{tpu_custom_call.1} parent=1 // pred_check
      _
    $region95: #{tpu_custom_call.1} parent=1 // pred_check_branch
      %1034 = sbr.rel (0) target = $region97
    $region96: #{tpu_custom_call.1} parent=1 // pred_region
      _
    $region97: #{tpu_custom_call.1} parent=1 // pred_fallthru
      _
    // Predicated region
    $region98: #{tpu_custom_call.1} parent=1 // pred_check
      _
    $region99: #{tpu_custom_call.1} parent=1 // pred_check_branch
      %1036 = sbr.rel (0) target = $region101
    $region100: #{tpu_custom_call.1} parent=1 // pred_region
      %1038 = dma.done [#allocation4], 128
    $region101: #{tpu_custom_call.1} parent=1 // pred_fallthru
      _
    // Predicated region
    $region102: #{tpu_custom_call.1} parent=1 // pred_check
      _
    $region103: #{tpu_custom_call.1} parent=1 // pred_check_branch
      %1040 = sbr.rel (0) target = $region105
    $region104: #{tpu_custom_call.1} parent=1 // pred_region
      _
    $region105: #{tpu_custom_call.1} parent=1 // pred_fallthru
      _
    %1041 = vsyncpa [#allocation3], 1
    %1042 = vsyncpa [#allocation6], 1
    %1043 = vsyncpa [#allocation9], 1
    %1044 = vsyncpa [#allocation12], 1
    %1045 = vsyncpa [#allocation4], 1

</llo_original>
